<compile_context>
chip_gen: v5e
topology: v5e:2x2
jax: 0.10.0
libtpu: 0.0.40
codegen_flags: <defaults>
</compile_context>

<pallas_src>
import functools
import math

import jax
import jax.numpy as jnp
from jax.experimental import pallas as pl
from jax.experimental.pallas import tpu as pltpu


MASK_TOKEN_ID = 32          # ESM <mask> id (not present in generated inputs)
LN_EPS = 1e-5


def _tpu_defaults():
    """(vmem_limit_bytes, default row tile) split by TPU generation."""
    try:
        kind = jax.devices()[0].device_kind.lower()
    except Exception:
        kind = ""
    if "v5" in kind or "v6" in kind:          # 128 MiB physical VMEM
        return 100 * 1024 * 1024, 1024
    return 40 * 1024 * 1024, 512              # v7x / unknown: 64 MiB physical VMEM


_VMEM_LIMIT, _TM_DEFAULT = _tpu_defaults()


def _pick_tile(dim, target, align):
    """Largest tile <= target that divides `dim` and is `align`-aligned; else the full dim."""
    if dim <= target:
        return dim
    best = dim
    t = align
    while t <= target:
        if dim % t == 0:
            best = t
        t += align
    return best


def _cparams(*sem):
    return pltpu.CompilerParams(dimension_semantics=sem,
                                vmem_limit_bytes=_VMEM_LIMIT)


# ----------------------------- Pallas kernels -----------------------------

def _ln_matmul_kernel(x_ref, g_ref, b_ref, w_ref, bias_ref, o_ref, xn_ref, *, act):
    """Fused LayerNorm + bf16 MXU matmul + bias (+ optional exact GELU).

    The LayerNorm (f32 stats + scale/shift + bf16 cast) runs only on the first
    N-tile of each row tile and is cached in the xn_ref VMEM scratch; all
    other N-tiles reuse it, so LN cost is paid once per row tile.
    """
    @pl.when(pl.program_id(1) == 0)
    def _ln():
        x = x_ref[...].astype(jnp.float32)
        mu = jnp.mean(x, axis=-1, keepdims=True)
        var = jnp.mean(jnp.square(x - mu), axis=-1, keepdims=True)
        xn = (x - mu) * jax.lax.rsqrt(var + LN_EPS)
        xn_ref[...] = (xn * g_ref[...] + b_ref[...]).astype(jnp.bfloat16)

    y = jnp.dot(xn_ref[...], w_ref[...],
                preferred_element_type=jnp.float32) + bias_ref[...]
    if act == "gelu":
        # exact (erf-based) GELU, matching HF ESM2.
        # TODO(synk): bf16-erf (v6e/v7x VALU win) skipped for lowering safety / numerics.
        y = 0.5 * y * (1.0 + jax.lax.erf(y * (1.0 / math.sqrt(2.0))))
    o_ref[...] = y.astype(o_ref.dtype)


def ln_matmul(x, gamma, beta, w, bias, act="none", out_dtype=jnp.bfloat16,
              tm=_TM_DEFAULT, tn=640):
    """out = act(LayerNorm(x) @ w + bias); x: [M, D] f32, w: [D, N] bf16."""
    M, D = x.shape
    N = w.shape[1]
    bm = _pick_tile(M, tm, 8)
    bn = _pick_tile(N, tn, 128)
    return pl.pallas_call(
        functools.partial(_ln_matmul_kernel, act=act),
        out_shape=jax.ShapeDtypeStruct((M, N), out_dtype),
        grid=(M // bm, N // bn),
        in_specs=[
            pl.BlockSpec((bm, D), lambda i, j: (i, 0)),
            pl.BlockSpec((1, D), lambda i, j: (0, 0)),
            pl.BlockSpec((1, D), lambda i, j: (0, 0)),
            pl.BlockSpec((D, bn), lambda i, j: (0, j)),
            pl.BlockSpec((1, bn), lambda i, j: (0, j)),
        ],
        out_specs=pl.BlockSpec((bm, bn), lambda i, j: (i, j)),
        scratch_shapes=[pltpu.VMEM((bm, D), jnp.bfloat16)],
        # j must be sequential: the LN scratch computed at j==0 is reused for j>0
        compiler_params=_cparams("parallel", "arbitrary"),
    )(x, gamma.reshape(1, D), beta.reshape(1, D), w, bias.reshape(1, N))


def _matmul_res_kernel(x_ref, w_ref, bias_ref, res_ref, o_ref):
    """Single-pass matmul (full K in VMEM) with bias + residual fused into the store."""
    y = jnp.dot(x_ref[...], w_ref[...], preferred_element_type=jnp.float32)
    o_ref[...] = (y + bias_ref[...] + res_ref[...]).astype(o_ref.dtype)


def _matmul_res_ktiled_kernel(x_ref, w_ref, bias_ref, res_ref, o_ref, acc_ref):
    """K-tiled matmul with f32 accumulator; bias + residual fused into the writeback."""
    @pl.when(pl.program_id(2) == 0)
    def _init():
        acc_ref[...] = jnp.zeros_like(acc_ref)

    acc_ref[...] += jnp.dot(x_ref[...], w_ref[...],
                            preferred_element_type=jnp.float32)

    @pl.when(pl.program_id(2) == pl.num_programs(2) - 1)
    def _done():
        o_ref[...] = (acc_ref[...] + bias_ref[...] + res_ref[...]).astype(o_ref.dtype)


def matmul_res(x, w, bias, res, tm=_TM_DEFAULT, tn=640, tk=None):
    """out = x @ w + bias + res; x: [M, K] bf16, w: [K, N] bf16, res: [M, N] f32.

    tk=None -> no reduction grid axis (used for the K=D output projection);
    otherwise a K-tiled accumulator kernel (used for the K=4D FFN-out matmul).
    """
    M, K = x.shape
    N = w.shape[1]
    bm = _pick_tile(M, tm, 8)
    bn = _pick_tile(N, tn, 128)

    if tk is None:
        return pl.pallas_call(
            _matmul_res_kernel,
            out_shape=jax.ShapeDtypeStruct((M, N), jnp.float32),
            grid=(M // bm, N // bn),
            in_specs=[
                pl.BlockSpec((bm, K), lambda i, j: (i, 0)),
                pl.BlockSpec((K, bn), lambda i, j: (0, j)),
                pl.BlockSpec((1, bn), lambda i, j: (0, j)),
                pl.BlockSpec((bm, bn), lambda i, j: (i, j)),
            ],
            out_specs=pl.BlockSpec((bm, bn), lambda i, j: (i, j)),
            compiler_params=_cparams("parallel", "parallel"),
        )(x, w, bias.reshape(1, N), res)

    bk = _pick_tile(K, tk, 128)
    return pl.pallas_call(
        _matmul_res_ktiled_kernel,
        out_shape=jax.ShapeDtypeStruct((M, N), jnp.float32),
        grid=(M // bm, N // bn, K // bk),
        in_specs=[
            pl.BlockSpec((bm, bk), lambda i, j, k: (i, k)),
            pl.BlockSpec((bk, bn), lambda i, j, k: (k, j)),
            pl.BlockSpec((1, bn), lambda i, j, k: (0, j)),
            pl.BlockSpec((bm, bn), lambda i, j, k: (i, j)),
        ],
        out_specs=pl.BlockSpec((bm, bn), lambda i, j, k: (i, j)),
        scratch_shapes=[pltpu.VMEM((bm, bn), jnp.float32)],
        compiler_params=_cparams("parallel", "parallel", "arbitrary"),
    )(x, w, bias.reshape(1, N), res)


def _attn_kernel(q_ref, k_ref, v_ref, bias_ref, cos_ref, sin_ref, o_ref, *, scale):
    """One (batch, head) per grid step, contiguous [L, Dh] q/k/v tiles.

    RoPE is applied in split-half form; the rotated halves are concatenated so
    QK^T is a single K=head_dim contraction on the MXU.
    """
    q = q_ref[0, 0].astype(jnp.float32)           # [L, Dh]
    k = k_ref[0, 0].astype(jnp.float32)
    v = v_ref[0, 0]                                # bf16 [L, Dh]
    ch = cos_ref[...]                              # [L, Dh/2]
    sh = sin_ref[...]
    half = ch.shape[-1]

    def rope(x):
        x1 = x[:, :half]
        x2 = x[:, half:]
        return jnp.concatenate([x1 * ch - x2 * sh, x2 * ch + x1 * sh], axis=-1)

    # query also carries the 1/sqrt(Dh) scale (RoPE is linear, so order is free)
    qr = (rope(q) * scale).astype(jnp.bfloat16)
    kr = rope(k).astype(jnp.bfloat16)

    s = jax.lax.dot_general(qr, kr, (((1,), (1,)), ((), ())),
                            preferred_element_type=jnp.float32)     # [L, L]
    s = s + bias_ref[0]                                             # additive key mask [1, L]
    s = s - jnp.max(s, axis=-1, keepdims=True)
    p = jnp.exp(s)
    p = p * pl.reciprocal(jnp.sum(p, axis=-1, keepdims=True), approx=True)
    ctx = jnp.dot(p.astype(v.dtype), v, preferred_element_type=jnp.float32)
    o_ref[0, 0] = ctx.astype(o_ref.dtype)


def attention(q, k, v, bias, cos, sin):
    """q/k/v: [B, H, L, Dh] bf16 -> ctx [B, H, L, Dh] bf16; bias: [B, 1, L]."""
    B, H, L, Dh = q.shape
    half = Dh // 2
    kernel = functools.partial(_attn_kernel, scale=Dh ** -0.5)
    return pl.pallas_call(
        kernel,
        out_shape=jax.ShapeDtypeStruct((B, H, L, Dh), jnp.bfloat16),
        grid=(B, H),
        in_specs=[
            pl.BlockSpec((1, 1, L, Dh), lambda b, h: (b, h, 0, 0)),
            pl.BlockSpec((1, 1, L, Dh), lambda b, h: (b, h, 0, 0)),
            pl.BlockSpec((1, 1, L, Dh), lambda b, h: (b, h, 0, 0)),
            pl.BlockSpec((1, 1, L), lambda b, h: (b, 0, 0)),
            pl.BlockSpec((L, half), lambda b, h: (0, 0)),
            pl.BlockSpec((L, half), lambda b, h: (0, 0)),
        ],
        out_specs=pl.BlockSpec((1, 1, L, Dh), lambda b, h: (b, h, 0, 0)),
        # both axes parallel: v7x's two TensorCores split B*H grid steps
        compiler_params=_cparams("parallel", "parallel"),
    )(q, k, v, bias, cos, sin)


# ------------------------------- glue / model -----------------------------

def rotary_tables(L, head_dim):
    # HF ESM rotary: emb = cat(freqs, freqs) -> the two cos/sin halves are identical,
    # so only the [L, Dh/2] half-tables are needed for the split-half RoPE form.
    inv_freq = 1.0 / (10000.0 ** (jnp.arange(0, head_dim, 2, dtype=jnp.float32) / head_dim))
    freqs = jnp.outer(jnp.arange(L, dtype=jnp.float32), inv_freq)     # [L, Dh/2]
    return jnp.cos(freqs), jnp.sin(freqs)


def esm_embed(params, x, mask):
    """EsmEmbeddings with token_dropout=True, rotary positions (no absolute PE)."""
    # TODO(synk): the data-dependent embedding row-gather stays in XLA (no clean
    # rectangular BlockSpec); everything downstream runs in Pallas.
    emb = jnp.take(params["word_emb"], x, axis=0)                     # [B, L, D] f32
    is_mask_tok = (x == MASK_TOKEN_ID)
    emb = jnp.where(is_mask_tok[..., None], 0.0, emb)
    mask_ratio_train = 0.15 * 0.8
    src_lengths = jnp.maximum(mask.sum(-1), 1.0)
    mask_ratio_observed = is_mask_tok.astype(jnp.float32).sum(-1) / src_lengths
    emb = emb * ((1.0 - mask_ratio_train) /
                 (1.0 - mask_ratio_observed))[:, None, None]
    emb = emb * mask[..., None]
    return emb


@functools.partial(jax.jit, static_argnames=("n_heads",))
def esm2_classifier_forward(params, x, mask, *, n_heads):
    """x: int32 [B, L] token ids; mask: float32 [B, L]; returns logits [B, num_labels]."""
    B, L = x.shape
    D = params["word_emb"].shape[1]
    head_dim = D // n_heads

    h = esm_embed(params, x, mask)                                    # [B, L, D] f32
    bias = (1.0 - mask)[:, None, :] * -1e9                            # [B, 1, L]
    cos, sin = rotary_tables(L, head_dim)

    h2 = h.reshape(B * L, D)                                          # residual stream (f32)
    for lp in params["layers"]:
        # --- pre-LN self-attention block: fused LN + packed [D,3D] QKV projection ---
        qkv = ln_matmul(h2, lp["ln1_g"], lp["ln1_b"], lp["w_qkv"], lp["b_qkv"])
        # split_heads to head-major [3, B, H, L, Dh] (XLA transpose, as in HF);
        # attention then reads contiguous per-head (L, Dh) tiles via BlockSpec.
        qkv5 = qkv.reshape(B, L, 3, n_heads, head_dim).transpose(2, 0, 3, 1, 4)
        ctx = attention(qkv5[0], qkv5[1], qkv5[2], bias, cos, sin)    # [B, H, L, Dh] bf16
        ctx2 = ctx.transpose(0, 2, 1, 3).reshape(B * L, D)            # merge_heads (XLA)
        # output projection (EsmSelfOutput) with the residual add fused in; K=D -> no K tiling
        h2 = matmul_res(ctx2, lp["wo"], lp["bo"], h2, tk=None)

        # --- pre-LN feed-forward block: fused LN + W_in (+ exact GELU), then W_out + residual ---
        inter = ln_matmul(h2, lp["ln2_g"], lp["ln2_b"], lp["w_in"], lp["b_in"], act="gelu")
        h2 = matmul_res(inter, lp["w_out"], lp["b_out"], h2, tk=1280)  # K=4D -> K-tiled accumulator

    # final emb_layer_norm_after: only the CLS row feeds the classifier head, so
    # normalize just those rows in XLA (a pallas_call here is pure launch overhead).
    cls = h2.reshape(B, L, D)[:, 0, :]                                # [B, D]
    mu = jnp.mean(cls, axis=-1, keepdims=True)
    var = jnp.mean(jnp.square(cls - mu), axis=-1, keepdims=True)
    cls = (cls - mu) * jax.lax.rsqrt(var + LN_EPS) * params["lnf_g"] + params["lnf_b"]

    # classification head Linear -> ReLU -> Dropout(inference: id) -> Linear,
    # kept in plain XLA: M=B, N=2 matmuls would be pure kernel-launch overhead.
    hidden = jnp.maximum(cls @ params["cls_w1"] + params["cls_b1"], 0.0)
    logits = hidden @ params["cls_w2"] + params["cls_b2"]
    return logits


def init_params(key, vocab, D, H, n_layers, ffn, num_labels):
    keys = iter(jax.random.split(key, 8 + 8 * n_layers))

    def tn(shape, std=0.02, dtype=jnp.float32):
        w = jax.random.truncated_normal(next(keys), -2.0, 2.0, shape, jnp.float32) * std
        return w.astype(dtype)

    params = {
        "word_emb": tn((vocab, D)),
        "layers": [],
        "lnf_g": jnp.ones((D,), jnp.float32),
        "lnf_b": jnp.zeros((D,), jnp.float32),
        # classification head: trunc_normal_(std=0.02) weights, zero biases
        "cls_w1": tn((D, D // 2)), "cls_b1": jnp.zeros((D // 2,), jnp.float32),
        "cls_w2": tn((D // 2, num_labels)), "cls_b2": jnp.zeros((num_labels,), jnp.float32),
    }
    for _ in range(n_layers):
        wq = tn((D, D), dtype=jnp.bfloat16)
        wk = tn((D, D), dtype=jnp.bfloat16)
        wv = tn((D, D), dtype=jnp.bfloat16)
        params["layers"].append({
            "ln1_g": jnp.ones((D,), jnp.float32), "ln1_b": jnp.zeros((D,), jnp.float32),
            # packed QKV projection: one [D, 3D] bf16 matmul (head-major columns per matrix)
            "w_qkv": jnp.concatenate([wq, wk, wv], axis=1),
            "b_qkv": jnp.zeros((3 * D,), jnp.float32),
            "wo": tn((D, D), dtype=jnp.bfloat16), "bo": jnp.zeros((D,), jnp.float32),
            "ln2_g": jnp.ones((D,), jnp.float32), "ln2_b": jnp.zeros((D,), jnp.float32),
            "w_in": tn((D, ffn), dtype=jnp.bfloat16), "b_in": jnp.zeros((ffn,), jnp.float32),
            "w_out": tn((ffn, D), dtype=jnp.bfloat16), "b_out": jnp.zeros((D,), jnp.float32),
        })
    return params


if __name__ == "__main__":
    # small synthetic config standing in for esm2_t33_650M (1280d / 33L / 20h)
    B, L = 2, 8
    VOCAB, D, H, N_LAYERS = 33, 32, 2, 2
    FFN = 4 * D
    NUM_LABELS = 2

    key = jax.random.PRNGKey(0)
    k_tok, k_par = jax.random.split(key)

    # token ids (avoid the <mask> id so token-dropout rescale is the train ratio)
    x = jax.random.randint(k_tok, (B, L), 0, 31, dtype=jnp.int32)
    mask = jnp.ones((B, L), jnp.float32).at[1, -2:].set(0.0)  # pad tail of row 1

    params = init_params(k_par, VOCAB, D, H, N_LAYERS, FFN, NUM_LABELS)

    logits = esm2_classifier_forward(params, x, mask, n_heads=H)
    jax.block_until_ready(logits)
    assert logits.shape == (B, NUM_LABELS)
    assert bool(jnp.all(jnp.isfinite(logits)))
    print("KERNEL_OK")
</pallas_src>

<mosaic_0001>
module attributes {stable_mosaic.version = 11 : i64} {
  func.func @_ln_matmul_kernel(%arg0: i32, %arg1: i32, %arg2: memref<16x32xf32, #tpu.memory_space<vmem>>, %arg3: memref<1x32xf32, #tpu.memory_space<vmem>>, %arg4: memref<1x32xf32, #tpu.memory_space<vmem>>, %arg5: memref<32x96xbf16, #tpu.memory_space<vmem>>, %arg6: memref<1x96xf32, #tpu.memory_space<vmem>>, %arg7: memref<16x96xbf16, #tpu.memory_space<vmem>>, %arg8: memref<16x32xbf16, #tpu.memory_space<vmem>>) attributes {dimension_semantics = [#tpu.dimension_semantics<parallel>, #tpu.dimension_semantics<arbitrary>], iteration_bounds = array<i64: 1, 1>, scalar_prefetch = 0 : i64, scratch_operands = 1 : i64, tpu.core_type = #tpu.core_type<tc>, window_params = [{transform_indices = @transform_0, window_bounds = array<i64: 16, 32>}, {pipeline_mode = #tpu.pipeline_mode<synchronous>, transform_indices = @transform_1, window_bounds = array<i64: 1, 32>}, {pipeline_mode = #tpu.pipeline_mode<synchronous>, transform_indices = @transform_2, window_bounds = array<i64: 1, 32>}, {transform_indices = @transform_3, window_bounds = array<i64: 32, 96>}, {transform_indices = @transform_4, window_bounds = array<i64: 1, 96>}, {transform_indices = @transform_5, window_bounds = array<i64: 16, 96>}]} {
    %c0_i32 = arith.constant 0 : i32
    %0 = arith.cmpi eq, %arg1, %c0_i32 : i32
    %1 = arith.extui %0 : i1 to i32
    %c0_i32_0 = arith.constant 0 : i32
    %2 = arith.cmpi ne, %1, %c0_i32_0 : i32
    scf.if %2 {
      %c0_8 = arith.constant 0 : index
      %c0_9 = arith.constant 0 : index
      %11 = vector.load %arg2[%c0_8, %c0_9] : memref<16x32xf32, #tpu.memory_space<vmem>>, vector<16x32xf32>
      %cst_10 = arith.constant dense<0.000000e+00> : vector<16xf32>
      %12 = vector.multi_reduction <add>, %11, %cst_10 [1] : vector<16x32xf32> to vector<16xf32>
      %13 = vector.shape_cast %12 : vector<16xf32> to vector<16x1xf32>
      %cst_11 = arith.constant 3.200000e+01 : f32
      %14 = vector.broadcast %cst_11 : f32 to vector<16x1xf32>
      %15 = arith.divf %13, %14 : vector<16x1xf32>
      %16 = vector.broadcast %15 : vector<16x1xf32> to vector<16x32xf32>
      %17 = arith.subf %11, %16 : vector<16x32xf32>
      %18 = arith.mulf %17, %17 : vector<16x32xf32>
      %cst_12 = arith.constant dense<0.000000e+00> : vector<16xf32>
      %19 = vector.multi_reduction <add>, %18, %cst_12 [1] : vector<16x32xf32> to vector<16xf32>
      %20 = vector.shape_cast %19 : vector<16xf32> to vector<16x1xf32>
      %cst_13 = arith.constant 3.200000e+01 : f32
      %21 = vector.broadcast %cst_13 : f32 to vector<16x1xf32>
      %22 = arith.divf %20, %21 : vector<16x1xf32>
      %23 = vector.broadcast %15 : vector<16x1xf32> to vector<16x32xf32>
      %24 = arith.subf %11, %23 : vector<16x32xf32>
      %cst_14 = arith.constant 9.99999974E-6 : f32
      %25 = vector.broadcast %cst_14 : f32 to vector<16x1xf32>
      %26 = arith.addf %22, %25 : vector<16x1xf32>
      %27 = math.rsqrt %26 : vector<16x1xf32>
      %28 = vector.broadcast %27 : vector<16x1xf32> to vector<16x32xf32>
      %29 = arith.mulf %24, %28 : vector<16x32xf32>
      %c0_15 = arith.constant 0 : index
      %c0_16 = arith.constant 0 : index
      %30 = vector.load %arg3[%c0_15, %c0_16] : memref<1x32xf32, #tpu.memory_space<vmem>>, vector<1x32xf32>
      %31 = vector.broadcast %30 : vector<1x32xf32> to vector<16x32xf32>
      %32 = arith.mulf %29, %31 : vector<16x32xf32>
      %c0_17 = arith.constant 0 : index
      %c0_18 = arith.constant 0 : index
      %33 = vector.load %arg4[%c0_17, %c0_18] : memref<1x32xf32, #tpu.memory_space<vmem>>, vector<1x32xf32>
      %34 = vector.broadcast %33 : vector<1x32xf32> to vector<16x32xf32>
      %35 = arith.addf %32, %34 : vector<16x32xf32>
      %36 = arith.truncf %35 : vector<16x32xf32> to vector<16x32xbf16>
      %c0_19 = arith.constant 0 : index
      %c0_20 = arith.constant 0 : index
      %37 = vector.load %arg8[%c0_19, %c0_20] : memref<16x32xbf16, #tpu.memory_space<vmem>>, vector<16x32xbf16>
      tpu.vector_store %arg8[%c0_19, %c0_20], %36 {strides = array<i32>} : memref<16x32xbf16, #tpu.memory_space<vmem>>, vector<16x32xbf16>,
    } else {
    }
    %c0 = arith.constant 0 : index
    %c0_1 = arith.constant 0 : index
    %3 = vector.load %arg8[%c0, %c0_1] : memref<16x32xbf16, #tpu.memory_space<vmem>>, vector<16x32xbf16>
    %c0_2 = arith.constant 0 : index
    %c0_3 = arith.constant 0 : index
    %4 = vector.load %arg5[%c0_2, %c0_3] : memref<32x96xbf16, #tpu.memory_space<vmem>>, vector<32x96xbf16>
    %cst = arith.constant dense<0.000000e+00> : vector<16x96xf32>
    %5 = tpu.matmul %3, %4, %cst {dimension_numbers = #tpu.dot_dimension_numbers<[1], [0], [0], [1], [0, 0, 1, 1], [], []>} : vector<16x32xbf16>, vector<32x96xbf16>, vector<16x96xf32> -> vector<16x96xf32>
    %c0_4 = arith.constant 0 : index
    %c0_5 = arith.constant 0 : index
    %6 = vector.load %arg6[%c0_4, %c0_5] : memref<1x96xf32, #tpu.memory_space<vmem>>, vector<1x96xf32>
    %7 = vector.broadcast %6 : vector<1x96xf32> to vector<16x96xf32>
    %8 = arith.addf %5, %7 : vector<16x96xf32>
    %9 = arith.truncf %8 : vector<16x96xf32> to vector<16x96xbf16>
    %c0_6 = arith.constant 0 : index
    %c0_7 = arith.constant 0 : index
    %10 = vector.load %arg7[%c0_6, %c0_7] : memref<16x96xbf16, #tpu.memory_space<vmem>>, vector<16x96xbf16>
    tpu.vector_store %arg7[%c0_6, %c0_7], %9 {strides = array<i32>} : memref<16x96xbf16, #tpu.memory_space<vmem>>, vector<16x96xbf16>,
    return
  }
  func.func @transform_0(%arg0: i32, %arg1: i32) -> (i32, i32) {
    %c0_i32 = arith.constant 0 : i32
    %c0_i32_0 = arith.constant 0 : i32
    return %arg0, %c0_i32 : i32, i32
  }
  func.func @transform_1(%arg0: i32, %arg1: i32) -> (i32, i32) {
    %c0_i32 = arith.constant 0 : i32
    %c0_i32_0 = arith.constant 0 : i32
    %c0_i32_1 = arith.constant 0 : i32
    return %c0_i32, %c0_i32_0 : i32, i32
  }
  func.func @transform_2(%arg0: i32, %arg1: i32) -> (i32, i32) {
    %c0_i32 = arith.constant 0 : i32
    %c0_i32_0 = arith.constant 0 : i32
    %c0_i32_1 = arith.constant 0 : i32
    return %c0_i32, %c0_i32_0 : i32, i32
  }
  func.func @transform_3(%arg0: i32, %arg1: i32) -> (i32, i32) {
    %c0_i32 = arith.constant 0 : i32
    %c0_i32_0 = arith.constant 0 : i32
    return %c0_i32, %arg1 : i32, i32
  }
  func.func @transform_4(%arg0: i32, %arg1: i32) -> (i32, i32) {
    %c0_i32 = arith.constant 0 : i32
    %c0_i32_0 = arith.constant 0 : i32
    return %c0_i32, %arg1 : i32, i32
  }
  func.func @transform_5(%arg0: i32, %arg1: i32) -> (i32, i32) {
    %c0_i32 = arith.constant 0 : i32
    return %arg0, %arg1 : i32, i32
  }
}

module attributes {stable_mosaic.version = 11 : i64} {
  func.func @_matmul_res_kernel(%arg0: i32, %arg1: i32, %arg2: memref<16x32xbf16, #tpu.memory_space<vmem>>, %arg3: memref<32x32xbf16, #tpu.memory_space<vmem>>, %arg4: memref<1x32xf32, #tpu.memory_space<vmem>>, %arg5: memref<16x32xf32, #tpu.memory_space<vmem>>, %arg6: memref<16x32xf32, #tpu.memory_space<vmem>>) attributes {dimension_semantics = [#tpu.dimension_semantics<parallel>, #tpu.dimension_semantics<parallel>], iteration_bounds = array<i64: 1, 1>, scalar_prefetch = 0 : i64, scratch_operands = 0 : i64, tpu.core_type = #tpu.core_type<tc>, window_params = [{transform_indices = @transform_0, window_bounds = array<i64: 16, 32>}, {transform_indices = @transform_1, window_bounds = array<i64: 32, 32>}, {transform_indices = @transform_2, window_bounds = array<i64: 1, 32>}, {transform_indices = @transform_3, window_bounds = array<i64: 16, 32>}, {transform_indices = @transform_4, window_bounds = array<i64: 16, 32>}]} {
    %c0 = arith.constant 0 : index
    %c0_0 = arith.constant 0 : index
    %0 = vector.load %arg2[%c0, %c0_0] : memref<16x32xbf16, #tpu.memory_space<vmem>>, vector<16x32xbf16>
    %c0_1 = arith.constant 0 : index
    %c0_2 = arith.constant 0 : index
    %1 = vector.load %arg3[%c0_1, %c0_2] : memref<32x32xbf16, #tpu.memory_space<vmem>>, vector<32x32xbf16>
    %cst = arith.constant dense<0.000000e+00> : vector<16x32xf32>
    %2 = tpu.matmul %0, %1, %cst {dimension_numbers = #tpu.dot_dimension_numbers<[1], [0], [0], [1], [0, 0, 1, 1], [], []>} : vector<16x32xbf16>, vector<32x32xbf16>, vector<16x32xf32> -> vector<16x32xf32>
    %c0_3 = arith.constant 0 : index
    %c0_4 = arith.constant 0 : index
    %3 = vector.load %arg4[%c0_3, %c0_4] : memref<1x32xf32, #tpu.memory_space<vmem>>, vector<1x32xf32>
    %4 = vector.broadcast %3 : vector<1x32xf32> to vector<16x32xf32>
    %5 = arith.addf %2, %4 : vector<16x32xf32>
    %c0_5 = arith.constant 0 : index
    %c0_6 = arith.constant 0 : index
    %6 = vector.load %arg5[%c0_5, %c0_6] : memref<16x32xf32, #tpu.memory_space<vmem>>, vector<16x32xf32>
    %7 = arith.addf %5, %6 : vector<16x32xf32>
    %c0_7 = arith.constant 0 : index
    %c0_8 = arith.constant 0 : index
    %8 = vector.load %arg6[%c0_7, %c0_8] : memref<16x32xf32, #tpu.memory_space<vmem>>, vector<16x32xf32>
    tpu.vector_store %arg6[%c0_7, %c0_8], %7 {strides = array<i32>} : memref<16x32xf32, #tpu.memory_space<vmem>>, vector<16x32xf32>,
    return
  }
  func.func @transform_0(%arg0: i32, %arg1: i32) -> (i32, i32) {
    %c0_i32 = arith.constant 0 : i32
    %c0_i32_0 = arith.constant 0 : i32
    return %arg0, %c0_i32 : i32, i32
  }
  func.func @transform_1(%arg0: i32, %arg1: i32) -> (i32, i32) {
    %c0_i32 = arith.constant 0 : i32
    %c0_i32_0 = arith.constant 0 : i32
    return %c0_i32, %arg1 : i32, i32
  }
  func.func @transform_2(%arg0: i32, %arg1: i32) -> (i32, i32) {
    %c0_i32 = arith.constant 0 : i32
    %c0_i32_0 = arith.constant 0 : i32
    return %c0_i32, %arg1 : i32, i32
  }
  func.func @transform_3(%arg0: i32, %arg1: i32) -> (i32, i32) {
    %c0_i32 = arith.constant 0 : i32
    return %arg0, %arg1 : i32, i32
  }
  func.func @transform_4(%arg0: i32, %arg1: i32) -> (i32, i32) {
    %c0_i32 = arith.constant 0 : i32
    return %arg0, %arg1 : i32, i32
  }
}

module attributes {stable_mosaic.version = 11 : i64} {
  func.func @_attn_kernel(%arg0: i32, %arg1: i32, %arg2: memref<1x1x8x16xbf16, #tpu.memory_space<vmem>>, %arg3: memref<1x1x8x16xbf16, #tpu.memory_space<vmem>>, %arg4: memref<1x1x8x16xbf16, #tpu.memory_space<vmem>>, %arg5: memref<1x1x8xf32, #tpu.memory_space<vmem>>, %arg6: memref<8x8xf32, #tpu.memory_space<vmem>>, %arg7: memref<8x8xf32, #tpu.memory_space<vmem>>, %arg8: memref<1x1x8x16xbf16, #tpu.memory_space<vmem>>) attributes {dimension_semantics = [#tpu.dimension_semantics<parallel>, #tpu.dimension_semantics<parallel>], iteration_bounds = array<i64: 2, 2>, scalar_prefetch = 0 : i64, scratch_operands = 0 : i64, tpu.core_type = #tpu.core_type<tc>, window_params = [{transform_indices = @transform_0, window_bounds = array<i64: 1, 1, 8, 16>}, {transform_indices = @transform_1, window_bounds = array<i64: 1, 1, 8, 16>}, {transform_indices = @transform_2, window_bounds = array<i64: 1, 1, 8, 16>}, {transform_indices = @transform_3, window_bounds = array<i64: 1, 1, 8>}, {pipeline_mode = #tpu.pipeline_mode<synchronous>, transform_indices = @transform_4, window_bounds = array<i64: 8, 8>}, {pipeline_mode = #tpu.pipeline_mode<synchronous>, transform_indices = @transform_5, window_bounds = array<i64: 8, 8>}, {transform_indices = @transform_6, window_bounds = array<i64: 1, 1, 8, 16>}]} {
    %c0 = arith.constant 0 : index
    %c0_0 = arith.constant 0 : index
    %c0_1 = arith.constant 0 : index
    %c0_2 = arith.constant 0 : index
    %0 = vector.load %arg2[%c0, %c0_0, %c0_1, %c0_2] : memref<1x1x8x16xbf16, #tpu.memory_space<vmem>>, vector<1x1x8x16xbf16>
    %1 = vector.shape_cast %0 : vector<1x1x8x16xbf16> to vector<8x16xbf16>
    %2 = arith.extf %1 : vector<8x16xbf16> to vector<8x16xf32>
    %c0_3 = arith.constant 0 : index
    %c0_4 = arith.constant 0 : index
    %c0_5 = arith.constant 0 : index
    %c0_6 = arith.constant 0 : index
    %3 = vector.load %arg3[%c0_3, %c0_4, %c0_5, %c0_6] : memref<1x1x8x16xbf16, #tpu.memory_space<vmem>>, vector<1x1x8x16xbf16>
    %4 = vector.shape_cast %3 : vector<1x1x8x16xbf16> to vector<8x16xbf16>
    %5 = arith.extf %4 : vector<8x16xbf16> to vector<8x16xf32>
    %c0_7 = arith.constant 0 : index
    %c0_8 = arith.constant 0 : index
    %c0_9 = arith.constant 0 : index
    %c0_10 = arith.constant 0 : index
    %6 = vector.load %arg4[%c0_7, %c0_8, %c0_9, %c0_10] : memref<1x1x8x16xbf16, #tpu.memory_space<vmem>>, vector<1x1x8x16xbf16>
    %7 = vector.shape_cast %6 : vector<1x1x8x16xbf16> to vector<8x16xbf16>
    %c0_11 = arith.constant 0 : index
    %c0_12 = arith.constant 0 : index
    %8 = vector.load %arg6[%c0_11, %c0_12] : memref<8x8xf32, #tpu.memory_space<vmem>>, vector<8x8xf32>
    %c0_13 = arith.constant 0 : index
    %c0_14 = arith.constant 0 : index
    %9 = vector.load %arg7[%c0_13, %c0_14] : memref<8x8xf32, #tpu.memory_space<vmem>>, vector<8x8xf32>
    %10 = vector.extract_strided_slice %2 {offsets = [0, 0], sizes = [8, 8], strides = [1, 1]} : vector<8x16xf32> to vector<8x8xf32>
    %11 = vector.extract_strided_slice %2 {offsets = [0, 8], sizes = [8, 8], strides = [1, 1]} : vector<8x16xf32> to vector<8x8xf32>
    %12 = arith.mulf %10, %8 : vector<8x8xf32>
    %13 = arith.mulf %11, %9 : vector<8x8xf32>
    %14 = arith.subf %12, %13 : vector<8x8xf32>
    %15 = arith.mulf %11, %8 : vector<8x8xf32>
    %16 = arith.mulf %10, %9 : vector<8x8xf32>
    %17 = arith.addf %15, %16 : vector<8x8xf32>
    %18 = tpu.concatenate %14, %17 in 1 : vector<8x8xf32>, vector<8x8xf32> -> vector<8x16xf32>
    %cst = arith.constant 2.500000e-01 : f32
    %19 = vector.broadcast %cst : f32 to vector<8x16xf32>
    %20 = arith.mulf %18, %19 : vector<8x16xf32>
    %21 = arith.truncf %20 : vector<8x16xf32> to vector<8x16xbf16>
    %22 = vector.extract_strided_slice %5 {offsets = [0, 0], sizes = [8, 8], strides = [1, 1]} : vector<8x16xf32> to vector<8x8xf32>
    %23 = vector.extract_strided_slice %5 {offsets = [0, 8], sizes = [8, 8], strides = [1, 1]} : vector<8x16xf32> to vector<8x8xf32>
    %24 = arith.mulf %22, %8 : vector<8x8xf32>
    %25 = arith.mulf %23, %9 : vector<8x8xf32>
    %26 = arith.subf %24, %25 : vector<8x8xf32>
    %27 = arith.mulf %23, %8 : vector<8x8xf32>
    %28 = arith.mulf %22, %9 : vector<8x8xf32>
    %29 = arith.addf %27, %28 : vector<8x8xf32>
    %30 = tpu.concatenate %26, %29 in 1 : vector<8x8xf32>, vector<8x8xf32> -> vector<8x16xf32>
    %31 = arith.truncf %30 : vector<8x16xf32> to vector<8x16xbf16>
    %cst_15 = arith.constant dense<0.000000e+00> : vector<8x8xf32>
    %32 = tpu.matmul %21, %31, %cst_15 {dimension_numbers = #tpu.dot_dimension_numbers<[1], [1], [0], [0], [0, 0, 1, 0], [], []>} : vector<8x16xbf16>, vector<8x16xbf16>, vector<8x8xf32> -> vector<8x8xf32>
    %c0_16 = arith.constant 0 : index
    %c0_17 = arith.constant 0 : index
    %c0_18 = arith.constant 0 : index
    %33 = vector.load %arg5[%c0_16, %c0_17, %c0_18] : memref<1x1x8xf32, #tpu.memory_space<vmem>>, vector<1x1x8xf32>
    %34 = vector.shape_cast %33 : vector<1x1x8xf32> to vector<1x8xf32>
    %35 = vector.broadcast %34 : vector<1x8xf32> to vector<8x8xf32>
    %36 = arith.addf %32, %35 : vector<8x8xf32>
    %cst_19 = arith.constant dense<0xFF800000> : vector<8xf32>
    %37 = vector.multi_reduction <maximumf>, %36, %cst_19 [1] : vector<8x8xf32> to vector<8xf32>
    %38 = vector.shape_cast %37 : vector<8xf32> to vector<8x1xf32>
    %39 = vector.broadcast %38 : vector<8x1xf32> to vector<8x8xf32>
    %40 = arith.subf %36, %39 : vector<8x8xf32>
    %41 = math.exp %40 : vector<8x8xf32>
    %cst_20 = arith.constant dense<0.000000e+00> : vector<8xf32>
    %42 = vector.multi_reduction <add>, %41, %cst_20 [1] : vector<8x8xf32> to vector<8xf32>
    %43 = vector.shape_cast %42 : vector<8xf32> to vector<8x1xf32>
    %44 = tpu.reciprocal %43 {approx = true} : vector<8x1xf32> -> vector<8x1xf32>
    %45 = vector.broadcast %44 : vector<8x1xf32> to vector<8x8xf32>
    %46 = arith.mulf %41, %45 : vector<8x8xf32>
    %47 = arith.truncf %46 : vector<8x8xf32> to vector<8x8xbf16>
    %cst_21 = arith.constant dense<0.000000e+00> : vector<8x16xf32>
    %48 = tpu.matmul %47, %7, %cst_21 {dimension_numbers = #tpu.dot_dimension_numbers<[1], [0], [0], [1], [0, 0, 1, 1], [], []>} : vector<8x8xbf16>, vector<8x16xbf16>, vector<8x16xf32> -> vector<8x16xf32>
    %49 = arith.truncf %48 : vector<8x16xf32> to vector<8x16xbf16>
    %c0_22 = arith.constant 0 : index
    %c0_23 = arith.constant 0 : index
    %c0_24 = arith.constant 0 : index
    %c0_25 = arith.constant 0 : index
    %50 = vector.load %arg8[%c0_22, %c0_23, %c0_24, %c0_25] : memref<1x1x8x16xbf16, #tpu.memory_space<vmem>>, vector<1x1x8x16xbf16>
    %51 = vector.shape_cast %50 : vector<1x1x8x16xbf16> to vector<8x16xbf16>
    %52 = vector.shape_cast %49 : vector<8x16xbf16> to vector<1x1x8x16xbf16>
    tpu.vector_store %arg8[%c0_22, %c0_23, %c0_24, %c0_25], %52 {strides = array<i32>} : memref<1x1x8x16xbf16, #tpu.memory_space<vmem>>, vector<1x1x8x16xbf16>,
    return
  }
  func.func @transform_0(%arg0: i32, %arg1: i32) -> (i32, i32, i32, i32) {
    %c0_i32 = arith.constant 0 : i32
    %c0_i32_0 = arith.constant 0 : i32
    %c0_i32_1 = arith.constant 0 : i32
    return %arg0, %arg1, %c0_i32, %c0_i32_0 : i32, i32, i32, i32
  }
  func.func @transform_1(%arg0: i32, %arg1: i32) -> (i32, i32, i32, i32) {
    %c0_i32 = arith.constant 0 : i32
    %c0_i32_0 = arith.constant 0 : i32
    %c0_i32_1 = arith.constant 0 : i32
    return %arg0, %arg1, %c0_i32, %c0_i32_0 : i32, i32, i32, i32
  }
  func.func @transform_2(%arg0: i32, %arg1: i32) -> (i32, i32, i32, i32) {
    %c0_i32 = arith.constant 0 : i32
    %c0_i32_0 = arith.constant 0 : i32
    %c0_i32_1 = arith.constant 0 : i32
    return %arg0, %arg1, %c0_i32, %c0_i32_0 : i32, i32, i32, i32
  }
  func.func @transform_3(%arg0: i32, %arg1: i32) -> (i32, i32, i32) {
    %c0_i32 = arith.constant 0 : i32
    %c0_i32_0 = arith.constant 0 : i32
    %c0_i32_1 = arith.constant 0 : i32
    return %arg0, %c0_i32, %c0_i32_0 : i32, i32, i32
  }
  func.func @transform_4(%arg0: i32, %arg1: i32) -> (i32, i32) {
    %c0_i32 = arith.constant 0 : i32
    %c0_i32_0 = arith.constant 0 : i32
    %c0_i32_1 = arith.constant 0 : i32
    return %c0_i32, %c0_i32_0 : i32, i32
  }
  func.func @transform_5(%arg0: i32, %arg1: i32) -> (i32, i32) {
    %c0_i32 = arith.constant 0 : i32
    %c0_i32_0 = arith.constant 0 : i32
    %c0_i32_1 = arith.constant 0 : i32
    return %c0_i32, %c0_i32_0 : i32, i32
  }
  func.func @transform_6(%arg0: i32, %arg1: i32) -> (i32, i32, i32, i32) {
    %c0_i32 = arith.constant 0 : i32
    %c0_i32_0 = arith.constant 0 : i32
    %c0_i32_1 = arith.constant 0 : i32
    return %arg0, %arg1, %c0_i32, %c0_i32_0 : i32, i32, i32, i32
  }
}

module attributes {stable_mosaic.version = 11 : i64} {
  func.func @_ln_matmul_kernel(%arg0: i32, %arg1: i32, %arg2: memref<16x32xf32, #tpu.memory_space<vmem>>, %arg3: memref<1x32xf32, #tpu.memory_space<vmem>>, %arg4: memref<1x32xf32, #tpu.memory_space<vmem>>, %arg5: memref<32x128xbf16, #tpu.memory_space<vmem>>, %arg6: memref<1x128xf32, #tpu.memory_space<vmem>>, %arg7: memref<16x128xbf16, #tpu.memory_space<vmem>>, %arg8: memref<16x32xbf16, #tpu.memory_space<vmem>>) attributes {dimension_semantics = [#tpu.dimension_semantics<parallel>, #tpu.dimension_semantics<arbitrary>], iteration_bounds = array<i64: 1, 1>, scalar_prefetch = 0 : i64, scratch_operands = 1 : i64, tpu.core_type = #tpu.core_type<tc>, window_params = [{transform_indices = @transform_0, window_bounds = array<i64: 16, 32>}, {pipeline_mode = #tpu.pipeline_mode<synchronous>, transform_indices = @transform_1, window_bounds = array<i64: 1, 32>}, {pipeline_mode = #tpu.pipeline_mode<synchronous>, transform_indices = @transform_2, window_bounds = array<i64: 1, 32>}, {transform_indices = @transform_3, window_bounds = array<i64: 32, 128>}, {transform_indices = @transform_4, window_bounds = array<i64: 1, 128>}, {transform_indices = @transform_5, window_bounds = array<i64: 16, 128>}]} {
    %c0_i32 = arith.constant 0 : i32
    %0 = arith.cmpi eq, %arg1, %c0_i32 : i32
    %1 = arith.extui %0 : i1 to i32
    %c0_i32_0 = arith.constant 0 : i32
    %2 = arith.cmpi ne, %1, %c0_i32_0 : i32
    scf.if %2 {
      %c0_11 = arith.constant 0 : index
      %c0_12 = arith.constant 0 : index
      %19 = vector.load %arg2[%c0_11, %c0_12] : memref<16x32xf32, #tpu.memory_space<vmem>>, vector<16x32xf32>
      %cst_13 = arith.constant dense<0.000000e+00> : vector<16xf32>
      %20 = vector.multi_reduction <add>, %19, %cst_13 [1] : vector<16x32xf32> to vector<16xf32>
      %21 = vector.shape_cast %20 : vector<16xf32> to vector<16x1xf32>
      %cst_14 = arith.constant 3.200000e+01 : f32
      %22 = vector.broadcast %cst_14 : f32 to vector<16x1xf32>
      %23 = arith.divf %21, %22 : vector<16x1xf32>
      %24 = vector.broadcast %23 : vector<16x1xf32> to vector<16x32xf32>
      %25 = arith.subf %19, %24 : vector<16x32xf32>
      %26 = arith.mulf %25, %25 : vector<16x32xf32>
      %cst_15 = arith.constant dense<0.000000e+00> : vector<16xf32>
      %27 = vector.multi_reduction <add>, %26, %cst_15 [1] : vector<16x32xf32> to vector<16xf32>
      %28 = vector.shape_cast %27 : vector<16xf32> to vector<16x1xf32>
      %cst_16 = arith.constant 3.200000e+01 : f32
      %29 = vector.broadcast %cst_16 : f32 to vector<16x1xf32>
      %30 = arith.divf %28, %29 : vector<16x1xf32>
      %31 = vector.broadcast %23 : vector<16x1xf32> to vector<16x32xf32>
      %32 = arith.subf %19, %31 : vector<16x32xf32>
      %cst_17 = arith.constant 9.99999974E-6 : f32
      %33 = vector.broadcast %cst_17 : f32 to vector<16x1xf32>
      %34 = arith.addf %30, %33 : vector<16x1xf32>
      %35 = math.rsqrt %34 : vector<16x1xf32>
      %36 = vector.broadcast %35 : vector<16x1xf32> to vector<16x32xf32>
      %37 = arith.mulf %32, %36 : vector<16x32xf32>
      %c0_18 = arith.constant 0 : index
      %c0_19 = arith.constant 0 : index
      %38 = vector.load %arg3[%c0_18, %c0_19] : memref<1x32xf32, #tpu.memory_space<vmem>>, vector<1x32xf32>
      %39 = vector.broadcast %38 : vector<1x32xf32> to vector<16x32xf32>
      %40 = arith.mulf %37, %39 : vector<16x32xf32>
      %c0_20 = arith.constant 0 : index
      %c0_21 = arith.constant 0 : index
      %41 = vector.load %arg4[%c0_20, %c0_21] : memref<1x32xf32, #tpu.memory_space<vmem>>, vector<1x32xf32>
      %42 = vector.broadcast %41 : vector<1x32xf32> to vector<16x32xf32>
      %43 = arith.addf %40, %42 : vector<16x32xf32>
      %44 = arith.truncf %43 : vector<16x32xf32> to vector<16x32xbf16>
      %c0_22 = arith.constant 0 : index
      %c0_23 = arith.constant 0 : index
      %45 = vector.load %arg8[%c0_22, %c0_23] : memref<16x32xbf16, #tpu.memory_space<vmem>>, vector<16x32xbf16>
      tpu.vector_store %arg8[%c0_22, %c0_23], %44 {strides = array<i32>} : memref<16x32xbf16, #tpu.memory_space<vmem>>, vector<16x32xbf16>,
    } else {
    }
    %c0 = arith.constant 0 : index
    %c0_1 = arith.constant 0 : index
    %3 = vector.load %arg8[%c0, %c0_1] : memref<16x32xbf16, #tpu.memory_space<vmem>>, vector<16x32xbf16>
    %c0_2 = arith.constant 0 : index
    %c0_3 = arith.constant 0 : index
    %4 = vector.load %arg5[%c0_2, %c0_3] : memref<32x128xbf16, #tpu.memory_space<vmem>>, vector<32x128xbf16>
    %cst = arith.constant dense<0.000000e+00> : vector<16x128xf32>
    %5 = tpu.matmul %3, %4, %cst {dimension_numbers = #tpu.dot_dimension_numbers<[1], [0], [0], [1], [0, 0, 1, 1], [], []>} : vector<16x32xbf16>, vector<32x128xbf16>, vector<16x128xf32> -> vector<16x128xf32>
    %c0_4 = arith.constant 0 : index
    %c0_5 = arith.constant 0 : index
    %6 = vector.load %arg6[%c0_4, %c0_5] : memref<1x128xf32, #tpu.memory_space<vmem>>, vector<1x128xf32>
    %7 = vector.broadcast %6 : vector<1x128xf32> to vector<16x128xf32>
    %8 = arith.addf %5, %7 : vector<16x128xf32>
    %cst_6 = arith.constant 5.000000e-01 : f32
    %9 = vector.broadcast %cst_6 : f32 to vector<16x128xf32>
    %10 = arith.mulf %9, %8 : vector<16x128xf32>
    %cst_7 = arith.constant 0.707106769 : f32
    %11 = vector.broadcast %cst_7 : f32 to vector<16x128xf32>
    %12 = arith.mulf %8, %11 : vector<16x128xf32>
    %13 = math.erf %12 : vector<16x128xf32>
    %cst_8 = arith.constant 1.000000e+00 : f32
    %14 = vector.broadcast %cst_8 : f32 to vector<16x128xf32>
    %15 = arith.addf %14, %13 : vector<16x128xf32>
    %16 = arith.mulf %10, %15 : vector<16x128xf32>
    %17 = arith.truncf %16 : vector<16x128xf32> to vector<16x128xbf16>
    %c0_9 = arith.constant 0 : index
    %c0_10 = arith.constant 0 : index
    %18 = vector.load %arg7[%c0_9, %c0_10] : memref<16x128xbf16, #tpu.memory_space<vmem>>, vector<16x128xbf16>
    tpu.vector_store %arg7[%c0_9, %c0_10], %17 {strides = array<i32>} : memref<16x128xbf16, #tpu.memory_space<vmem>>, vector<16x128xbf16>,
    return
  }
  func.func @transform_0(%arg0: i32, %arg1: i32) -> (i32, i32) {
    %c0_i32 = arith.constant 0 : i32
    %c0_i32_0 = arith.constant 0 : i32
    return %arg0, %c0_i32 : i32, i32
  }
  func.func @transform_1(%arg0: i32, %arg1: i32) -> (i32, i32) {
    %c0_i32 = arith.constant 0 : i32
    %c0_i32_0 = arith.constant 0 : i32
    %c0_i32_1 = arith.constant 0 : i32
    return %c0_i32, %c0_i32_0 : i32, i32
  }
  func.func @transform_2(%arg0: i32, %arg1: i32) -> (i32, i32) {
    %c0_i32 = arith.constant 0 : i32
    %c0_i32_0 = arith.constant 0 : i32
    %c0_i32_1 = arith.constant 0 : i32
    return %c0_i32, %c0_i32_0 : i32, i32
  }
  func.func @transform_3(%arg0: i32, %arg1: i32) -> (i32, i32) {
    %c0_i32 = arith.constant 0 : i32
    %c0_i32_0 = arith.constant 0 : i32
    return %c0_i32, %arg1 : i32, i32
  }
  func.func @transform_4(%arg0: i32, %arg1: i32) -> (i32, i32) {
    %c0_i32 = arith.constant 0 : i32
    %c0_i32_0 = arith.constant 0 : i32
    return %c0_i32, %arg1 : i32, i32
  }
  func.func @transform_5(%arg0: i32, %arg1: i32) -> (i32, i32) {
    %c0_i32 = arith.constant 0 : i32
    return %arg0, %arg1 : i32, i32
  }
}

module attributes {stable_mosaic.version = 11 : i64} {
  func.func @_matmul_res_ktiled_kernel(%arg0: i32, %arg1: i32, %arg2: i32, %arg3: memref<16x128xbf16, #tpu.memory_space<vmem>>, %arg4: memref<128x32xbf16, #tpu.memory_space<vmem>>, %arg5: memref<1x32xf32, #tpu.memory_space<vmem>>, %arg6: memref<16x32xf32, #tpu.memory_space<vmem>>, %arg7: memref<16x32xf32, #tpu.memory_space<vmem>>, %arg8: memref<16x32xf32, #tpu.memory_space<vmem>>) attributes {dimension_semantics = [#tpu.dimension_semantics<parallel>, #tpu.dimension_semantics<parallel>, #tpu.dimension_semantics<arbitrary>], iteration_bounds = array<i64: 1, 1, 1>, scalar_prefetch = 0 : i64, scratch_operands = 1 : i64, tpu.core_type = #tpu.core_type<tc>, window_params = [{transform_indices = @transform_0, window_bounds = array<i64: 16, 128>}, {transform_indices = @transform_1, window_bounds = array<i64: 128, 32>}, {transform_indices = @transform_2, window_bounds = array<i64: 1, 32>}, {transform_indices = @transform_3, window_bounds = array<i64: 16, 32>}, {transform_indices = @transform_4, window_bounds = array<i64: 16, 32>}]} {
    %c0_i32 = arith.constant 0 : i32
    %0 = arith.cmpi eq, %arg2, %c0_i32 : i32
    %1 = arith.extui %0 : i1 to i32
    %c0_i32_0 = arith.constant 0 : i32
    %2 = arith.cmpi ne, %1, %c0_i32_0 : i32
    scf.if %2 {
      %cst_10 = arith.constant 0.000000e+00 : f32
      %12 = vector.broadcast %cst_10 : f32 to vector<16x32xf32>
      %c0_11 = arith.constant 0 : index
      %c0_12 = arith.constant 0 : index
      %13 = vector.load %arg8[%c0_11, %c0_12] : memref<16x32xf32, #tpu.memory_space<vmem>>, vector<16x32xf32>
      tpu.vector_store %arg8[%c0_11, %c0_12], %12 {strides = array<i32>} : memref<16x32xf32, #tpu.memory_space<vmem>>, vector<16x32xf32>,
    } else {
    }
    %c0 = arith.constant 0 : index
    %c0_1 = arith.constant 0 : index
    %3 = vector.load %arg8[%c0, %c0_1] : memref<16x32xf32, #tpu.memory_space<vmem>>, vector<16x32xf32>
    %c0_2 = arith.constant 0 : index
    %c0_3 = arith.constant 0 : index
    %4 = vector.load %arg3[%c0_2, %c0_3] : memref<16x128xbf16, #tpu.memory_space<vmem>>, vector<16x128xbf16>
    %c0_4 = arith.constant 0 : index
    %c0_5 = arith.constant 0 : index
    %5 = vector.load %arg4[%c0_4, %c0_5] : memref<128x32xbf16, #tpu.memory_space<vmem>>, vector<128x32xbf16>
    %cst = arith.constant dense<0.000000e+00> : vector<16x32xf32>
    %6 = tpu.matmul %4, %5, %cst {dimension_numbers = #tpu.dot_dimension_numbers<[1], [0], [0], [1], [0, 0, 1, 1], [], []>} : vector<16x128xbf16>, vector<128x32xbf16>, vector<16x32xf32> -> vector<16x32xf32>
    %7 = arith.addf %3, %6 : vector<16x32xf32>
    %c0_6 = arith.constant 0 : index
    %c0_7 = arith.constant 0 : index
    %8 = vector.load %arg8[%c0_6, %c0_7] : memref<16x32xf32, #tpu.memory_space<vmem>>, vector<16x32xf32>
    tpu.vector_store %arg8[%c0_6, %c0_7], %7 {strides = array<i32>} : memref<16x32xf32, #tpu.memory_space<vmem>>, vector<16x32xf32>,
    %c0_i32_8 = arith.constant 0 : i32
    %9 = arith.cmpi eq, %arg2, %c0_i32_8 : i32
    %10 = arith.extui %9 : i1 to i32
    %c0_i32_9 = arith.constant 0 : i32
    %11 = arith.cmpi ne, %10, %c0_i32_9 : i32
    scf.if %11 {
      %c0_10 = arith.constant 0 : index
      %c0_11 = arith.constant 0 : index
      %12 = vector.load %arg8[%c0_10, %c0_11] : memref<16x32xf32, #tpu.memory_space<vmem>>, vector<16x32xf32>
      %c0_12 = arith.constant 0 : index
      %c0_13 = arith.constant 0 : index
      %13 = vector.load %arg5[%c0_12, %c0_13] : memref<1x32xf32, #tpu.memory_space<vmem>>, vector<1x32xf32>
      %14 = vector.broadcast %13 : vector<1x32xf32> to vector<16x32xf32>
      %15 = arith.addf %12, %14 : vector<16x32xf32>
      %c0_14 = arith.constant 0 : index
      %c0_15 = arith.constant 0 : index
      %16 = vector.load %arg6[%c0_14, %c0_15] : memref<16x32xf32, #tpu.memory_space<vmem>>, vector<16x32xf32>
      %17 = arith.addf %15, %16 : vector<16x32xf32>
      %c0_16 = arith.constant 0 : index
      %c0_17 = arith.constant 0 : index
      %18 = vector.load %arg7[%c0_16, %c0_17] : memref<16x32xf32, #tpu.memory_space<vmem>>, vector<16x32xf32>
      tpu.vector_store %arg7[%c0_16, %c0_17], %17 {strides = array<i32>} : memref<16x32xf32, #tpu.memory_space<vmem>>, vector<16x32xf32>,
    } else {
    }
    return
  }
  func.func @transform_0(%arg0: i32, %arg1: i32, %arg2: i32) -> (i32, i32) {
    %c0_i32 = arith.constant 0 : i32
    return %arg0, %arg2 : i32, i32
  }
  func.func @transform_1(%arg0: i32, %arg1: i32, %arg2: i32) -> (i32, i32) {
    %c0_i32 = arith.constant 0 : i32
    return %arg2, %arg1 : i32, i32
  }
  func.func @transform_2(%arg0: i32, %arg1: i32, %arg2: i32) -> (i32, i32) {
    %c0_i32 = arith.constant 0 : i32
    %c0_i32_0 = arith.constant 0 : i32
    return %c0_i32, %arg1 : i32, i32
  }
  func.func @transform_3(%arg0: i32, %arg1: i32, %arg2: i32) -> (i32, i32) {
    %c0_i32 = arith.constant 0 : i32
    return %arg0, %arg1 : i32, i32
  }
  func.func @transform_4(%arg0: i32, %arg1: i32, %arg2: i32) -> (i32, i32) {
    %c0_i32 = arith.constant 0 : i32
    return %arg0, %arg1 : i32, i32
  }
}

</mosaic_0001>

<llo_original>
// kernel: esm2_classifier_forward.10
$region0: #{esm2_classifier_forward.10}
  #allocation0 [shape = 'u32[]', space=smem, size = 0x4, offset = 0x4, fixed_abs, tag = 'smem constant byte address 0x4 - core index']
  #allocation1 [shape = 'u32[72,128]{1,0:T(1,128)}', space=vmem, size = 0x9000, scoped, tag = 'internal scratch']
  #allocation2 [shape = 'bf16[16,32]{1,0:T(8,128)(2,1)}', space=vmem, size = 0x1000, scoped, tag = 'scratch operand']
  %s0 = inlined_call_operand.vmem [shape: f32[16,32], index: 0, kind: input, shape index: {}]
  %s1 = inlined_call_operand.vmem [shape: f32[1,32], index: 1, kind: input, shape index: {}]
  %s2 = inlined_call_operand.vmem [shape: f32[1,32], index: 2, kind: input, shape index: {}]
  %s3 = inlined_call_operand.vmem [shape: bf16[32,96], index: 3, kind: input, shape index: {}]
  %s4 = inlined_call_operand.vmem [shape: f32[1,96], index: 4, kind: input, shape index: {}]
  %s5 = inlined_call_operand.vmem [shape: bf16[16,96], index: 5, kind: output, shape index: {}]
  %s6 = sld [smem:[#allocation0]]
  $region34: #{esm2_classifier_forward.10} parent=0
    _
  %s8 = ssub.s32 1, %s6
  %s9 = scalar_select 0, %s8, %s6
  // Predicated region
  $region2: #{esm2_classifier_forward.10} parent=0 // pred_check
    _
  $region3: #{esm2_classifier_forward.10} parent=0 // pred_check_branch
    %11 = sbr.rel (0) target = $region5
  $region4: #{esm2_classifier_forward.10} parent=0 // pred_region
    _
  $region5: #{esm2_classifier_forward.10} parent=0 // pred_fallthru
    _
  // Predicated region
  $region6: #{esm2_classifier_forward.10} parent=0 // pred_check
    _
  $region7: #{esm2_classifier_forward.10} parent=0 // pred_check_branch
    %13 = sbr.rel (0) target = $region9
  $region8: #{esm2_classifier_forward.10} parent=0 // pred_region
    _
  $region9: #{esm2_classifier_forward.10} parent=0 // pred_fallthru
    _
  // Predicated region
  $region10: #{esm2_classifier_forward.10} parent=0 // pred_check
    _
  $region11: #{esm2_classifier_forward.10} parent=0 // pred_check_branch
    %15 = sbr.rel (0) target = $region13
  $region12: #{esm2_classifier_forward.10} parent=0 // pred_region
    _
  $region13: #{esm2_classifier_forward.10} parent=0 // pred_fallthru
    _
  // Predicated region
  $region14: #{esm2_classifier_forward.10} parent=0 // pred_check
    _
  $region15: #{esm2_classifier_forward.10} parent=0 // pred_check_branch
    %17 = sbr.rel (0) target = $region17
  $region16: #{esm2_classifier_forward.10} parent=0 // pred_region
    _
  $region17: #{esm2_classifier_forward.10} parent=0 // pred_fallthru
    _
  // Predicated region
  $region18: #{esm2_classifier_forward.10} parent=0 // pred_check
    _
  $region19: #{esm2_classifier_forward.10} parent=0 // pred_check_branch
    %19 = sbr.rel (0) target = $region21
  $region20: #{esm2_classifier_forward.10} parent=0 // pred_region
    _
  $region21: #{esm2_classifier_forward.10} parent=0 // pred_fallthru
    _
  %p21 = scmp.eq.s32.totalorder 0, 0
  // Predicated region
  $region22: #{esm2_classifier_forward.10} parent=0 // pred_check
    %p22 = pneg %p21
  $region23: #{esm2_classifier_forward.10} parent=0 // pred_check_branch
    %24 = sbr.rel (%p22) target = $region25
  $region24: #{esm2_classifier_forward.10} parent=0 // pred_region
    %v25 = vld [vmem:[%s0] sm:$0xff]
    %v26 = vld [vmem:[%s0 + $0x8] sm:$0xff]
    %vm27 = vcmask 261120
    %v28 = vsel %vm27, %v25, 0.0
    %29 = vadd.xlane.f32.xlu0 %v28
    %v30 = vpop.xlane.xlu0 %29
    %v31 = vsel %vm27, %v26, 0.0
    %32 = vadd.xlane.f32.xlu0 %v31
    %v33 = vpop.xlane.xlu0 %32
    %v34 = vrcp.pop 32.0
    %v35 = vmul.f32 32.0, %v34
    %v36 = vsub.f32 1.0, %v35
    %v37 = vmul.f32 %v34, %v36
    %v38 = vadd.f32 %v34, %v37
    %vm39 = vweird.f32 %v34
    %v40 = vsel %vm39, %v34, %v38
    %v41 = vmul.f32 %v30, %v40
    %v42 = vmul.f32 %v33, %v40
    %v43 = vsub.f32 %v25, %v41
    %v44 = vsub.f32 %v26, %v42
    %v45 = vmul.f32 %v43, %v43
    %v46 = vmul.f32 %v44, %v44
    %v47 = vsel %vm27, %v45, 0.0
    %48 = vadd.xlane.f32.xlu0 %v47
    %v49 = vpop.xlane.xlu0 %48
    %v50 = vsel %vm27, %v46, 0.0
    %51 = vadd.xlane.f32.xlu0 %v50
    %v52 = vpop.xlane.xlu0 %51
    %v53 = vmul.f32 %v49, %v40
    %v54 = vmul.f32 %v52, %v40
    %v55 = vadd.f32 %v53, 1e-05
    %v56 = vadd.f32 %v54, 1e-05
    %v57 = vrsqrt.pop %v55
    %v58 = vmul.f32 %v57, %v55
    %v59 = vmul.f32 %v58, %v57
    %v60 = vmul.f32 0.5, %v59
    %v61 = vsub.f32 1.5, %v60
    %v62 = vmul.f32 %v57, %v61
    %vm63 = vweird.f32 %v55
    %vm64 = vweird.f32 %v57
    %vm65 = vmor %vm63, %vm64
    %v66 = vsel %vm65, %v57, %v62
    %v67 = vrsqrt.pop %v56
    %v68 = vmul.f32 %v67, %v56
    %v69 = vmul.f32 %v68, %v67
    %v70 = vmul.f32 0.5, %v69
    %v71 = vsub.f32 1.5, %v70
    %v72 = vmul.f32 %v67, %v71
    %vm73 = vweird.f32 %v56
    %vm74 = vweird.f32 %v67
    %vm75 = vmor %vm73, %vm74
    %v76 = vsel %vm75, %v67, %v72
    %v77 = vmul.f32 %v43, %v66
    %v78 = vmul.f32 %v44, %v76
    %v79 = vld [vmem:[%s1] sm:$0x1]
    %v81 = vperm.slane %v79, 0
    %v83 = vmul.f32 %v77, %v81
    %v84 = vmul.f32 %v78, %v81
    %v85 = vld [vmem:[%s2] sm:$0x1]
    %v87 = vperm.slane %v85, 0
    %v89 = vadd.f32 %v83, %v87
    %v90 = vadd.f32 %v84, %v87
    %v91 = vpack.c.bf16 %v89, %v89
    %v92 = vpack.c.bf16 %v90, %v90
    %vm93 = vcmask 257024
    %94 = vst.msk [vmem:[#allocation2] sm:$0xf] %vm93, %v91
    %95 = vst.msk [vmem:[#allocation2 + $0x4] sm:$0xf] %vm93, %v92
  $region25: #{esm2_classifier_forward.10} parent=0 // pred_fallthru
    _
  %v96 = vld [vmem:[#allocation2] sm:$0xf]
  %v97 = vld [vmem:[#allocation2 + $0x4] sm:$0xf]
  %v98 = vld [vmem:[%s3] sm:$0xf]
  %v99 = vld [vmem:[%s3 + $0x4] sm:$0xf]
  %v100 = vld [vmem:[%s3 + $0x8] sm:$0xf]
  %v101 = vld [vmem:[%s3 + $0xc] sm:$0xf]
  %v102 = vld [vmem:[%s4] sm:$0x1]
  %v104 = vperm.slane %v102, 0
  %v108 = vunpack.c.l.b16 %v96
  %v109 = vunpack.c.l.b16 %v97
  %v110 = vpack.c.b16 %v109, %v108
  %v115 = vunpack.c.l.b16 %v98
  %v116 = vunpack.c.l.b16 %v99
  %v117 = vunpack.c.l.b16 %v100
  %v118 = vunpack.c.l.b16 %v101
  %v119 = vpack.c.b16 %v116, %v115
  %v120 = vpack.c.b16 %v118, %v117
  %vm123 = vcmask 261120
  %v125 = vsel %vm123, %v110, 0
  %127 = vmatpush.bf16.msra.mxu0 0
  %128 = vmatpush.bf16.msra.mxu0 0
  %129 = vmatpush.bf16.msra.mxu0 0
  %130 = vmatpush.bf16.msra.mxu0 0
  %131 = vmatpush.bf16.msra.mxu0 0
  %132 = vmatpush.bf16.msra.mxu0 0
  %133 = vmatpush.bf16.msra.mxu0 %v120
  %134 = vmatpush.bf16.msra.mxu0 %v119
  %135 = vmatmul.bf16.gmra.mxu0 %v125
  %v136 = vpop.f32.mrf.mxu0
  %v137 = vadd.f32 %v104, %v136
  %v138 = vpop.f32.mrf.mxu0
  %v139 = vadd.f32 %v104, %v138
  %140 = vdwg.mxu0
  %v141 = vpack.c.bf16 %v137, %v137
  %v142 = vpack.c.bf16 %v139, %v139
  %vm143 = vcmask 781312
  %144 = vst.msk [vmem:[%s5] sm:$0xf] %vm143, %v141
  %145 = vst.msk [vmem:[%s5 + $0x4] sm:$0xf] %vm143, %v142
  // Predicated region
  $region26: #{esm2_classifier_forward.10} parent=0 // pred_check
    _
  $region27: #{esm2_classifier_forward.10} parent=0 // pred_check_branch
    %147 = sbr.rel (0) target = $region29
  $region28: #{esm2_classifier_forward.10} parent=0 // pred_region
    _
  $region29: #{esm2_classifier_forward.10} parent=0 // pred_fallthru
    _
  // Predicated region
  $region30: #{esm2_classifier_forward.10} parent=0 // pred_check
    _
  $region31: #{esm2_classifier_forward.10} parent=0 // pred_check_branch
    %149 = sbr.rel (0) target = $region33
  $region32: #{esm2_classifier_forward.10} parent=0 // pred_region
    _
  $region33: #{esm2_classifier_forward.10} parent=0 // pred_fallthru
    _

// kernel: esm2_classifier_forward.13
$region0: #{esm2_classifier_forward.13}
  #allocation0 [shape = 'u32[]', space=smem, size = 0x4, offset = 0x4, fixed_abs, tag = 'smem constant byte address 0x4 - core index']
  #allocation1 [shape = 'u32[72,128]{1,0:T(1,128)}', space=vmem, size = 0x9000, scoped, tag = 'internal scratch']
  #allocation2 [shape = 'bf16[16,32]{1,0:T(8,128)(2,1)}', space=vmem, size = 0x1000, scoped, tag = 'scratch operand']
  %s0 = inlined_call_operand.vmem [shape: f32[16,32], index: 0, kind: input, shape index: {}]
  %s1 = inlined_call_operand.vmem [shape: f32[1,32], index: 1, kind: input, shape index: {}]
  %s2 = inlined_call_operand.vmem [shape: f32[1,32], index: 2, kind: input, shape index: {}]
  %s3 = inlined_call_operand.vmem [shape: bf16[32,128], index: 3, kind: input, shape index: {}]
  %s4 = inlined_call_operand.vmem [shape: f32[1,128], index: 4, kind: input, shape index: {}]
  %s5 = inlined_call_operand.vmem [shape: bf16[16,128], index: 5, kind: output, shape index: {}]
  %s6 = sld [smem:[#allocation0]]
  $region34: #{esm2_classifier_forward.13} parent=0
    _
  %s8 = ssub.s32 1, %s6
  %s9 = scalar_select 0, %s8, %s6
  // Predicated region
  $region2: #{esm2_classifier_forward.13} parent=0 // pred_check
    _
  $region3: #{esm2_classifier_forward.13} parent=0 // pred_check_branch
    %11 = sbr.rel (0) target = $region5
  $region4: #{esm2_classifier_forward.13} parent=0 // pred_region
    _
  $region5: #{esm2_classifier_forward.13} parent=0 // pred_fallthru
    _
  // Predicated region
  $region6: #{esm2_classifier_forward.13} parent=0 // pred_check
    _
  $region7: #{esm2_classifier_forward.13} parent=0 // pred_check_branch
    %13 = sbr.rel (0) target = $region9
  $region8: #{esm2_classifier_forward.13} parent=0 // pred_region
    _
  $region9: #{esm2_classifier_forward.13} parent=0 // pred_fallthru
    _
  // Predicated region
  $region10: #{esm2_classifier_forward.13} parent=0 // pred_check
    _
  $region11: #{esm2_classifier_forward.13} parent=0 // pred_check_branch
    %15 = sbr.rel (0) target = $region13
  $region12: #{esm2_classifier_forward.13} parent=0 // pred_region
    _
  $region13: #{esm2_classifier_forward.13} parent=0 // pred_fallthru
    _
  // Predicated region
  $region14: #{esm2_classifier_forward.13} parent=0 // pred_check
    _
  $region15: #{esm2_classifier_forward.13} parent=0 // pred_check_branch
    %17 = sbr.rel (0) target = $region17
  $region16: #{esm2_classifier_forward.13} parent=0 // pred_region
    _
  $region17: #{esm2_classifier_forward.13} parent=0 // pred_fallthru
    _
  // Predicated region
  $region18: #{esm2_classifier_forward.13} parent=0 // pred_check
    _
  $region19: #{esm2_classifier_forward.13} parent=0 // pred_check_branch
    %19 = sbr.rel (0) target = $region21
  $region20: #{esm2_classifier_forward.13} parent=0 // pred_region
    _
  $region21: #{esm2_classifier_forward.13} parent=0 // pred_fallthru
    _
  %p21 = scmp.eq.s32.totalorder 0, 0
  // Predicated region
  $region22: #{esm2_classifier_forward.13} parent=0 // pred_check
    %p22 = pneg %p21
  $region23: #{esm2_classifier_forward.13} parent=0 // pred_check_branch
    %24 = sbr.rel (%p22) target = $region25
  $region24: #{esm2_classifier_forward.13} parent=0 // pred_region
    %v25 = vld [vmem:[%s0] sm:$0xff]
    %v26 = vld [vmem:[%s0 + $0x8] sm:$0xff]
    %vm27 = vcmask 261120
    %v28 = vsel %vm27, %v25, 0.0
    %29 = vadd.xlane.f32.xlu0 %v28
    %v30 = vpop.xlane.xlu0 %29
    %v31 = vsel %vm27, %v26, 0.0
    %32 = vadd.xlane.f32.xlu0 %v31
    %v33 = vpop.xlane.xlu0 %32
    %v34 = vrcp.pop 32.0
    %v35 = vmul.f32 32.0, %v34
    %v36 = vsub.f32 1.0, %v35
    %v37 = vmul.f32 %v34, %v36
    %v38 = vadd.f32 %v34, %v37
    %vm39 = vweird.f32 %v34
    %v40 = vsel %vm39, %v34, %v38
    %v41 = vmul.f32 %v30, %v40
    %v42 = vmul.f32 %v33, %v40
    %v43 = vsub.f32 %v25, %v41
    %v44 = vsub.f32 %v26, %v42
    %v45 = vmul.f32 %v43, %v43
    %v46 = vmul.f32 %v44, %v44
    %v47 = vsel %vm27, %v45, 0.0
    %48 = vadd.xlane.f32.xlu0 %v47
    %v49 = vpop.xlane.xlu0 %48
    %v50 = vsel %vm27, %v46, 0.0
    %51 = vadd.xlane.f32.xlu0 %v50
    %v52 = vpop.xlane.xlu0 %51
    %v53 = vmul.f32 %v49, %v40
    %v54 = vmul.f32 %v52, %v40
    %v55 = vadd.f32 %v53, 1e-05
    %v56 = vadd.f32 %v54, 1e-05
    %v57 = vrsqrt.pop %v55
    %v58 = vmul.f32 %v57, %v55
    %v59 = vmul.f32 %v58, %v57
    %v60 = vmul.f32 0.5, %v59
    %v61 = vsub.f32 1.5, %v60
    %v62 = vmul.f32 %v57, %v61
    %vm63 = vweird.f32 %v55
    %vm64 = vweird.f32 %v57
    %vm65 = vmor %vm63, %vm64
    %v66 = vsel %vm65, %v57, %v62
    %v67 = vrsqrt.pop %v56
    %v68 = vmul.f32 %v67, %v56
    %v69 = vmul.f32 %v68, %v67
    %v70 = vmul.f32 0.5, %v69
    %v71 = vsub.f32 1.5, %v70
    %v72 = vmul.f32 %v67, %v71
    %vm73 = vweird.f32 %v56
    %vm74 = vweird.f32 %v67
    %vm75 = vmor %vm73, %vm74
    %v76 = vsel %vm75, %v67, %v72
    %v77 = vmul.f32 %v43, %v66
    %v78 = vmul.f32 %v44, %v76
    %v79 = vld [vmem:[%s1] sm:$0x1]
    %v81 = vperm.slane %v79, 0
    %v83 = vmul.f32 %v77, %v81
    %v84 = vmul.f32 %v78, %v81
    %v85 = vld [vmem:[%s2] sm:$0x1]
    %v87 = vperm.slane %v85, 0
    %v89 = vadd.f32 %v83, %v87
    %v90 = vadd.f32 %v84, %v87
    %v91 = vpack.c.bf16 %v89, %v89
    %v92 = vpack.c.bf16 %v90, %v90
    %vm93 = vcmask 257024
    %94 = vst.msk [vmem:[#allocation2] sm:$0xf] %vm93, %v91
    %95 = vst.msk [vmem:[#allocation2 + $0x4] sm:$0xf] %vm93, %v92
  $region25: #{esm2_classifier_forward.13} parent=0 // pred_fallthru
    _
  %v96 = vld [vmem:[#allocation2] sm:$0xf]
  %v97 = vld [vmem:[#allocation2 + $0x4] sm:$0xf]
  %v98 = vld [vmem:[%s3] sm:$0xf]
  %v99 = vld [vmem:[%s3 + $0x4] sm:$0xf]
  %v100 = vld [vmem:[%s3 + $0x8] sm:$0xf]
  %v101 = vld [vmem:[%s3 + $0xc] sm:$0xf]
  %v102 = vld [vmem:[%s4] sm:$0x1]
  %v104 = vperm.slane %v102, 0
  %v108 = vunpack.c.l.b16 %v96
  %v109 = vunpack.c.l.b16 %v97
  %v110 = vpack.c.b16 %v109, %v108
  %v115 = vunpack.c.l.b16 %v98
  %v116 = vunpack.c.l.b16 %v99
  %v117 = vunpack.c.l.b16 %v100
  %v118 = vunpack.c.l.b16 %v101
  %v119 = vpack.c.b16 %v116, %v115
  %v120 = vpack.c.b16 %v118, %v117
  %vm123 = vcmask 261120
  %v125 = vsel %vm123, %v110, 0
  %127 = vmatpush.bf16.msra.mxu0 0
  %128 = vmatpush.bf16.msra.mxu0 0
  %129 = vmatpush.bf16.msra.mxu0 0
  %130 = vmatpush.bf16.msra.mxu0 0
  %131 = vmatpush.bf16.msra.mxu0 0
  %132 = vmatpush.bf16.msra.mxu0 0
  %133 = vmatpush.bf16.msra.mxu0 %v120
  %134 = vmatpush.bf16.msra.mxu0 %v119
  %135 = vmatmul.bf16.gmra.mxu0 %v125
  %v136 = vpop.f32.mrf.mxu0
  %v137 = vadd.f32 %v104, %v136
  %v138 = vpop.f32.mrf.mxu0
  %v139 = vadd.f32 %v104, %v138
  %140 = vdwg.mxu0
  %v141 = vmul.f32 %v137, 0.5
  %v142 = vmul.f32 %v139, 0.5
  %v143 = vmul.f32 %v137, 0.70710677
  %v144 = vmul.f32 %v139, 0.70710677
  %v145 = vmul.f32 %v143, %v143
  %v146 = vmin.f32 16.0, %v145
  %v147 = vmul.f32 %v146, 2.1237322e-06
  %v148 = vadd.f32 %v147, 0.00028619796
  %v149 = vmul.f32 %v146, %v148
  %v150 = vadd.f32 %v149, 0.0036580483
  %v151 = vmul.f32 %v146, %v150
  %v152 = vadd.f32 %v151, 0.05243302
  %v153 = vmul.f32 %v146, %v152
  %v154 = vadd.f32 %v153, 0.18741608
  %v155 = vmul.f32 %v146, %v154
  %v156 = vadd.f32 %v155, 1.1283791
  %v157 = vmul.f32 %v143, %v156
  %v158 = vmul.f32 %v146, 3.8918573e-05
  %v159 = vadd.f32 %v158, 0.001143296
  %v160 = vmul.f32 %v146, %v159
  %v161 = vadd.f32 %v160, 0.014752088
  %v162 = vmul.f32 %v146, %v161
  %v163 = vadd.f32 %v162, 0.112945676
  %v164 = vmul.f32 %v146, %v163
  %v165 = vadd.f32 %v164, 0.4994258
  %v166 = vmul.f32 %v146, %v165
  %v167 = vadd.f32 %v166, 1.0
  %v168 = vrcp.pop %v167
  %v169 = vmul.f32 %v167, %v168
  %v170 = vsub.f32 1.0, %v169
  %v171 = vmul.f32 %v168, %v170
  %v172 = vadd.f32 %v168, %v171
  %vm173 = vweird.f32 %v167
  %vm174 = vweird.f32 %v168
  %vm175 = vmor %vm173, %vm174
  %v176 = vsel %vm175, %v168, %v172
  %v177 = vand.u32 2147483647, %v167
  %vm178 = vcmp.eq.f32.partialorder %v177, 8.507059e+37
  %v179 = vand.u32 %v167, 2147483648
  %v180 = vor.u32 1.1754944e-38, %v179
  %v181 = vsel %vm178, %v180, %v176
  %v182 = vmul.f32 %v157, %v181
  %v183 = vmin.f32 %v182, 1.0
  %v184 = vmax.f32 %v183, -1.0
  %v185 = vmul.f32 %v144, %v144
  %v186 = vmin.f32 16.0, %v185
  %v187 = vmul.f32 %v186, 2.1237322e-06
  %v188 = vadd.f32 %v187, 0.00028619796
  %v189 = vmul.f32 %v186, %v188
  %v190 = vadd.f32 %v189, 0.0036580483
  %v191 = vmul.f32 %v186, %v190
  %v192 = vadd.f32 %v191, 0.05243302
  %v193 = vmul.f32 %v186, %v192
  %v194 = vadd.f32 %v193, 0.18741608
  %v195 = vmul.f32 %v186, %v194
  %v196 = vadd.f32 %v195, 1.1283791
  %v197 = vmul.f32 %v144, %v196
  %v198 = vmul.f32 %v186, 3.8918573e-05
  %v199 = vadd.f32 %v198, 0.001143296
  %v200 = vmul.f32 %v186, %v199
  %v201 = vadd.f32 %v200, 0.014752088
  %v202 = vmul.f32 %v186, %v201
  %v203 = vadd.f32 %v202, 0.112945676
  %v204 = vmul.f32 %v186, %v203
  %v205 = vadd.f32 %v204, 0.4994258
  %v206 = vmul.f32 %v186, %v205
  %v207 = vadd.f32 %v206, 1.0
  %v208 = vrcp.pop %v207
  %v209 = vmul.f32 %v207, %v208
  %v210 = vsub.f32 1.0, %v209
  %v211 = vmul.f32 %v208, %v210
  %v212 = vadd.f32 %v208, %v211
  %vm213 = vweird.f32 %v207
  %vm214 = vweird.f32 %v208
  %vm215 = vmor %vm213, %vm214
  %v216 = vsel %vm215, %v208, %v212
  %v217 = vand.u32 2147483647, %v207
  %vm218 = vcmp.eq.f32.partialorder %v217, 8.507059e+37
  %v219 = vand.u32 %v207, 2147483648
  %v220 = vor.u32 1.1754944e-38, %v219
  %v221 = vsel %vm218, %v220, %v216
  %v222 = vmul.f32 %v197, %v221
  %v223 = vmin.f32 %v222, 1.0
  %v224 = vmax.f32 %v223, -1.0
  %v225 = vadd.f32 %v184, 1.0
  %v226 = vadd.f32 %v224, 1.0
  %v227 = vmul.f32 %v141, %v225
  %v228 = vmul.f32 %v142, %v226
  %v229 = vpack.c.bf16 %v227, %v227
  %v230 = vpack.c.bf16 %v228, %v228
  %231 = vst [vmem:[%s5] sm:$0xf] %v229
  %232 = vst [vmem:[%s5 + $0x4] sm:$0xf] %v230
  // Predicated region
  $region26: #{esm2_classifier_forward.13} parent=0 // pred_check
    _
  $region27: #{esm2_classifier_forward.13} parent=0 // pred_check_branch
    %234 = sbr.rel (0) target = $region29
  $region28: #{esm2_classifier_forward.13} parent=0 // pred_region
    _
  $region29: #{esm2_classifier_forward.13} parent=0 // pred_fallthru
    _
  // Predicated region
  $region30: #{esm2_classifier_forward.13} parent=0 // pred_check
    _
  $region31: #{esm2_classifier_forward.13} parent=0 // pred_check_branch
    %236 = sbr.rel (0) target = $region33
  $region32: #{esm2_classifier_forward.13} parent=0 // pred_region
    _
  $region33: #{esm2_classifier_forward.13} parent=0 // pred_fallthru
    _

// kernel: esm2_classifier_forward.12
$region0: #{esm2_classifier_forward.12}
  #allocation0 [shape = 'u32[]', space=smem, size = 0x4, offset = 0x4, fixed_abs, tag = 'smem constant byte address 0x4 - core index']
  #allocation1 [shape = 'u32[72,128]{1,0:T(1,128)}', space=vmem, size = 0x9000, scoped, tag = 'internal scratch']
  %s0 = inlined_call_operand.vmem [shape: bf16[16,32], index: 0, kind: input, shape index: {}]
  %s1 = inlined_call_operand.vmem [shape: bf16[32,32], index: 1, kind: input, shape index: {}]
  %s2 = inlined_call_operand.vmem [shape: f32[1,32], index: 2, kind: input, shape index: {}]
  %s3 = inlined_call_operand.vmem [shape: f32[16,32], index: 3, kind: input, shape index: {}]
  %s4 = inlined_call_operand.vmem [shape: f32[16,32], index: 4, kind: output, shape index: {}]
  %s5 = sld [smem:[#allocation0]]
  $region26: #{esm2_classifier_forward.12} parent=0
    _
  %s7 = ssub.s32 1, %s5
  %s8 = scalar_select 0, %s7, %s5
  // Predicated region
  $region2: #{esm2_classifier_forward.12} parent=0 // pred_check
    _
  $region3: #{esm2_classifier_forward.12} parent=0 // pred_check_branch
    %10 = sbr.rel (0) target = $region5
  $region4: #{esm2_classifier_forward.12} parent=0 // pred_region
    _
  $region5: #{esm2_classifier_forward.12} parent=0 // pred_fallthru
    _
  // Predicated region
  $region6: #{esm2_classifier_forward.12} parent=0 // pred_check
    _
  $region7: #{esm2_classifier_forward.12} parent=0 // pred_check_branch
    %12 = sbr.rel (0) target = $region9
  $region8: #{esm2_classifier_forward.12} parent=0 // pred_region
    _
  $region9: #{esm2_classifier_forward.12} parent=0 // pred_fallthru
    _
  // Predicated region
  $region10: #{esm2_classifier_forward.12} parent=0 // pred_check
    _
  $region11: #{esm2_classifier_forward.12} parent=0 // pred_check_branch
    %14 = sbr.rel (0) target = $region13
  $region12: #{esm2_classifier_forward.12} parent=0 // pred_region
    _
  $region13: #{esm2_classifier_forward.12} parent=0 // pred_fallthru
    _
  // Predicated region
  $region14: #{esm2_classifier_forward.12} parent=0 // pred_check
    _
  $region15: #{esm2_classifier_forward.12} parent=0 // pred_check_branch
    %16 = sbr.rel (0) target = $region17
  $region16: #{esm2_classifier_forward.12} parent=0 // pred_region
    _
  $region17: #{esm2_classifier_forward.12} parent=0 // pred_fallthru
    _
  %v18 = vld [vmem:[%s0] sm:$0xf]
  %v19 = vld [vmem:[%s0 + $0x4] sm:$0xf]
  %v20 = vld [vmem:[%s1] sm:$0xf]
  %v21 = vld [vmem:[%s1 + $0x4] sm:$0xf]
  %v22 = vld [vmem:[%s1 + $0x8] sm:$0xf]
  %v23 = vld [vmem:[%s1 + $0xc] sm:$0xf]
  %v24 = vld [vmem:[%s2] sm:$0x1]
  %v26 = vperm.slane %v24, 0
  %v30 = vunpack.c.l.b16 %v18
  %v31 = vunpack.c.l.b16 %v19
  %v32 = vpack.c.b16 %v31, %v30
  %v37 = vunpack.c.l.b16 %v20
  %v38 = vunpack.c.l.b16 %v21
  %v39 = vunpack.c.l.b16 %v22
  %v40 = vunpack.c.l.b16 %v23
  %v41 = vpack.c.b16 %v38, %v37
  %v42 = vpack.c.b16 %v40, %v39
  %vm45 = vcmask 261120
  %v47 = vsel %vm45, %v32, 0
  %49 = vmatpush.bf16.msra.mxu0 0
  %50 = vmatpush.bf16.msra.mxu0 0
  %51 = vmatpush.bf16.msra.mxu0 0
  %52 = vmatpush.bf16.msra.mxu0 0
  %53 = vmatpush.bf16.msra.mxu0 0
  %54 = vmatpush.bf16.msra.mxu0 0
  %55 = vmatpush.bf16.msra.mxu0 %v42
  %56 = vmatpush.bf16.msra.mxu0 %v41
  %57 = vmatmul.bf16.gmra.mxu0 %v47
  %v58 = vpop.f32.mrf.mxu0
  %v59 = vadd.f32 %v26, %v58
  %v60 = vpop.f32.mrf.mxu0
  %v61 = vadd.f32 %v26, %v60
  %62 = vdwg.mxu0
  %v63 = vld [vmem:[%s3] sm:$0xff]
  %v64 = vld [vmem:[%s3 + $0x8] sm:$0xff]
  %v65 = vadd.f32 %v59, %v63
  %v66 = vadd.f32 %v61, %v64
  %67 = vst.msk [vmem:[%s4] sm:$0xff] %vm45, %v65
  %68 = vst.msk [vmem:[%s4 + $0x8] sm:$0xff] %vm45, %v66
  // Predicated region
  $region18: #{esm2_classifier_forward.12} parent=0 // pred_check
    _
  $region19: #{esm2_classifier_forward.12} parent=0 // pred_check_branch
    %70 = sbr.rel (0) target = $region21
  $region20: #{esm2_classifier_forward.12} parent=0 // pred_region
    _
  $region21: #{esm2_classifier_forward.12} parent=0 // pred_fallthru
    _
  // Predicated region
  $region22: #{esm2_classifier_forward.12} parent=0 // pred_check
    _
  $region23: #{esm2_classifier_forward.12} parent=0 // pred_check_branch
    %72 = sbr.rel (0) target = $region25
  $region24: #{esm2_classifier_forward.12} parent=0 // pred_region
    _
  $region25: #{esm2_classifier_forward.12} parent=0 // pred_fallthru
    _

// kernel: esm2_classifier_forward.11
$region0: #{esm2_classifier_forward.11}
  #allocation0 [shape = 'u32[]', space=smem, size = 0x4, offset = 0x4, fixed_abs, tag = 'smem constant byte address 0x4 - core index']
  #allocation1 [shape = 'u32[72,128]{1,0:T(1,128)}', space=vmem, size = 0x9000, scoped, tag = 'internal scratch']
  %s0 = inlined_call_operand.vmem [shape: bf16[2,2,8,16], index: 0, kind: input, shape index: {}]
  %s1 = inlined_call_operand.vmem [shape: bf16[2,2,8,16], index: 1, kind: input, shape index: {}]
  %s2 = inlined_call_operand.vmem [shape: bf16[2,2,8,16], index: 2, kind: input, shape index: {}]
  %s3 = inlined_call_operand.vmem [shape: f32[2,1,8], index: 3, kind: input, shape index: {}]
  %s4 = inlined_call_operand.vmem [shape: f32[8,8], index: 4, kind: input, shape index: {}]
  %s5 = inlined_call_operand.vmem [shape: f32[8,8], index: 5, kind: input, shape index: {}]
  %s6 = inlined_call_operand.vmem [shape: bf16[2,2,8,16], index: 6, kind: output, shape index: {}]
  %s7 = sld [smem:[#allocation0]]
  $region57: #{esm2_classifier_forward.11} parent=0
    _
  %s9 = ssub.s32 1, %s7
  %s10 = scalar_select 0, %s9, %s7
  loop: start=0, step=1, limit=6
  $region2: #{esm2_classifier_forward.11} parent=0 // loop_pre_header
    _
  $region3: #{esm2_classifier_forward.11} parent=0 // loop_header
    %s12 = sphi 0, %s16
    %p13 = scmp.ge.s32.totalorder %s12, 6
    %s19 = sphi 0, %s31
    %s20 = sphi 0, %s27
    %s21 = sphi 0, %s19
    %s22 = sphi 0, %s20
    %s23 = sphi 0, %s21
    %s24 = sphi 0, %s22
    %s36 = sphi 0, %s38
    %s39 = sphi 0, %s36
    %s40 = sphi 0, %s39
    %s56 = sphi 0, %s40
    %s64 = sphi 0, %s66
    %s67 = sphi 0, %s64
    %s68 = sphi 0, %s67
    %s84 = sphi 0, %s68
    %s92 = sphi 0, %s94
    %s95 = sphi 0, %s92
    %s96 = sphi 0, %s95
    %s112 = sphi 0, %s96
    %s118 = sphi 0, %s120
    %s121 = sphi 0, %s118
    %s122 = sphi 0, %s121
    %s138 = sphi 0, %s122
    %s142 = sphi 0, %s142
    %s144 = sphi 0, %s142
    %s145 = sphi 0, %s144
    %s159 = sphi 0, %s145
    %s163 = sphi 0, %s163
    %s165 = sphi 0, %s163
    %s166 = sphi 0, %s165
    %s180 = sphi 0, %s166
    %s188 = sphi 0, %s190
    %s191 = sphi 0, %s188
    %s192 = sphi 0, %s191
    %s208 = sphi 0, %s192
  $region4: #{esm2_classifier_forward.11} parent=0 // loop_header_branch
    %15 = sbr.rel (%p13) target = $region8
  $region5: #{esm2_classifier_forward.11} parent=0 // loop_body
    %s17 = ssub.s32 %s12, 1
    %s18 = ssub.s32 %s12, 2
    %s25 = sadd.s32 1, %s20
    %p26 = scmp.ge.s32.totalorder %s25, 2
    %s27 = scalar_select %p26, 0, %s25
    %s28 = sadd.s32 1, %s19
    %s29 = scalar_select %p26, %s28, %s19
    %p30 = scmp.ge.s32.totalorder %s29, 2
    %s31 = scalar_select %p30, 0, %s29
    %s32 = ssub.s32 %s19, %s31
    %s33 = ssub.s32 %s20, %s27
    %s34 = sor.u32 %s32, %s33
    %p35 = scmp.eq.s32.totalorder %s34, 0
    %s37 = sadd.s32 %s36, 1
    %s38 = scalar_select %p35, %s36, %s37
    %p41 = pneg %p35
    %p42 = scmp.eq.s32.totalorder %s12, 3
    %p43 = por %p41, %p42
    %p44 = scmp.ne.s32.totalorder %s36, %s39
    %p45 = scmp.eq.s32.totalorder %s12, 0
    %p46 = por %p44, %p45
    %p47 = scmp.ne.s32.totalorder %s36, %s39
    %p48 = scmp.eq.s32.totalorder %s17, 3
    %p49 = por %p47, %p48
    %p50 = scmp.ne.s32.totalorder %s39, %s40
    %p51 = scmp.eq.s32.totalorder %s17, 0
    %p52 = por %p50, %p51
    %p53 = scmp.ne.s32.totalorder %s39, %s40
    %p54 = scmp.eq.s32.totalorder %s18, 3
    %p55 = por %p53, %p54
    %p57 = scmp.ne.s32.totalorder %s40, %s56
    %p58 = scmp.eq.s32.totalorder %s18, 0
    %p59 = por %p57, %p58
    %s60 = ssub.s32 %s19, %s31
    %s61 = ssub.s32 %s20, %s27
    %s62 = sor.u32 %s60, %s61
    %p63 = scmp.eq.s32.totalorder %s62, 0
    %s65 = sadd.s32 %s64, 1
    %s66 = scalar_select %p63, %s64, %s65
    %p69 = pneg %p63
    %p70 = scmp.eq.s32.totalorder %s12, 3
    %p71 = por %p69, %p70
    %p72 = scmp.ne.s32.totalorder %s64, %s67
    %p73 = scmp.eq.s32.totalorder %s12, 0
    %p74 = por %p72, %p73
    %p75 = scmp.ne.s32.totalorder %s64, %s67
    %p76 = scmp.eq.s32.totalorder %s17, 3
    %p77 = por %p75, %p76
    %p78 = scmp.ne.s32.totalorder %s67, %s68
    %p79 = scmp.eq.s32.totalorder %s17, 0
    %p80 = por %p78, %p79
    %p81 = scmp.ne.s32.totalorder %s67, %s68
    %p82 = scmp.eq.s32.totalorder %s18, 3
    %p83 = por %p81, %p82
    %p85 = scmp.ne.s32.totalorder %s68, %s84
    %p86 = scmp.eq.s32.totalorder %s18, 0
    %p87 = por %p85, %p86
    %s88 = ssub.s32 %s19, %s31
    %s89 = ssub.s32 %s20, %s27
    %s90 = sor.u32 %s88, %s89
    %p91 = scmp.eq.s32.totalorder %s90, 0
    %s93 = sadd.s32 %s92, 1
    %s94 = scalar_select %p91, %s92, %s93
    %p97 = pneg %p91
    %p98 = scmp.eq.s32.totalorder %s12, 3
    %p99 = por %p97, %p98
    %p100 = scmp.ne.s32.totalorder %s92, %s95
    %p101 = scmp.eq.s32.totalorder %s12, 0
    %p102 = por %p100, %p101
    %p103 = scmp.ne.s32.totalorder %s92, %s95
    %p104 = scmp.eq.s32.totalorder %s17, 3
    %p105 = por %p103, %p104
    %p106 = scmp.ne.s32.totalorder %s95, %s96
    %p107 = scmp.eq.s32.totalorder %s17, 0
    %p108 = por %p106, %p107
    %p109 = scmp.ne.s32.totalorder %s95, %s96
    %p110 = scmp.eq.s32.totalorder %s18, 3
    %p111 = por %p109, %p110
    %p113 = scmp.ne.s32.totalorder %s96, %s112
    %p114 = scmp.eq.s32.totalorder %s18, 0
    %p115 = por %p113, %p114
    %s116 = ssub.s32 %s19, %s31
    %p117 = scmp.eq.s32.totalorder %s116, 0
    %s119 = sadd.s32 %s118, 1
    %s120 = scalar_select %p117, %s118, %s119
    %p123 = pneg %p117
    %p124 = scmp.eq.s32.totalorder %s12, 3
    %p125 = por %p123, %p124
    %p126 = scmp.ne.s32.totalorder %s118, %s121
    %p127 = scmp.eq.s32.totalorder %s12, 0
    %p128 = por %p126, %p127
    %p129 = scmp.ne.s32.totalorder %s118, %s121
    %p130 = scmp.eq.s32.totalorder %s17, 3
    %p131 = por %p129, %p130
    %p132 = scmp.ne.s32.totalorder %s121, %s122
    %p133 = scmp.eq.s32.totalorder %s17, 0
    %p134 = por %p132, %p133
    %p135 = scmp.ne.s32.totalorder %s121, %s122
    %p136 = scmp.eq.s32.totalorder %s18, 3
    %p137 = por %p135, %p136
    %p139 = scmp.ne.s32.totalorder %s122, %s138
    %p140 = scmp.eq.s32.totalorder %s18, 0
    %p141 = por %p139, %p140
    %s143 = sadd.s32 %s142, 1
    %p146 = scmp.eq.s32.totalorder %s12, 3
    %p147 = scmp.ne.s32.totalorder %s142, %s144
    %p148 = scmp.eq.s32.totalorder %s12, 0
    %p149 = por %p147, %p148
    %p150 = scmp.ne.s32.totalorder %s142, %s144
    %p151 = scmp.eq.s32.totalorder %s17, 3
    %p152 = por %p150, %p151
    %p153 = scmp.ne.s32.totalorder %s144, %s145
    %p154 = scmp.eq.s32.totalorder %s17, 0
    %p155 = por %p153, %p154
    %p156 = scmp.ne.s32.totalorder %s144, %s145
    %p157 = scmp.eq.s32.totalorder %s18, 3
    %p158 = por %p156, %p157
    %p160 = scmp.ne.s32.totalorder %s145, %s159
    %p161 = scmp.eq.s32.totalorder %s18, 0
    %p162 = por %p160, %p161
    %s164 = sadd.s32 %s163, 1
    %p167 = scmp.eq.s32.totalorder %s12, 3
    %p168 = scmp.ne.s32.totalorder %s163, %s165
    %p169 = scmp.eq.s32.totalorder %s12, 0
    %p170 = por %p168, %p169
    %p171 = scmp.ne.s32.totalorder %s163, %s165
    %p172 = scmp.eq.s32.totalorder %s17, 3
    %p173 = por %p171, %p172
    %p174 = scmp.ne.s32.totalorder %s165, %s166
    %p175 = scmp.eq.s32.totalorder %s17, 0
    %p176 = por %p174, %p175
    %p177 = scmp.ne.s32.totalorder %s165, %s166
    %p178 = scmp.eq.s32.totalorder %s18, 3
    %p179 = por %p177, %p178
    %p181 = scmp.ne.s32.totalorder %s166, %s180
    %p182 = scmp.eq.s32.totalorder %s18, 0
    %p183 = por %p181, %p182
    %s184 = ssub.s32 %s19, %s31
    %s185 = ssub.s32 %s20, %s27
    %s186 = sor.u32 %s184, %s185
    %p187 = scmp.eq.s32.totalorder %s186, 0
    %s189 = sadd.s32 %s188, 1
    %s190 = scalar_select %p187, %s188, %s189
    %p193 = pneg %p187
    %p194 = scmp.eq.s32.totalorder %s12, 3
    %p195 = por %p193, %p194
    %p196 = scmp.ne.s32.totalorder %s188, %s191
    %p197 = scmp.eq.s32.totalorder %s12, 0
    %p198 = por %p196, %p197
    %p199 = scmp.ne.s32.totalorder %s188, %s191
    %p200 = scmp.eq.s32.totalorder %s17, 3
    %p201 = por %p199, %p200
    %p202 = scmp.ne.s32.totalorder %s191, %s192
    %p203 = scmp.eq.s32.totalorder %s17, 0
    %p204 = por %p202, %p203
    %p205 = scmp.ne.s32.totalorder %s191, %s192
    %p206 = scmp.eq.s32.totalorder %s18, 3
    %p207 = por %p205, %p206
    %p209 = scmp.ne.s32.totalorder %s192, %s208
    %p210 = scmp.eq.s32.totalorder %s18, 0
    %p211 = por %p209, %p210
    %p212 = scmp.le.s32.totalorder 1, %s12
    %p213 = scmp.lt.s32.totalorder %s12, 5
    %p214 = pnand %p212, %p213
    %p215 = pneg %p214
    // Predicated region
    $region9: #{esm2_classifier_forward.11} parent=5 // pred_check
      _
    $region10: #{esm2_classifier_forward.11} parent=5 // pred_check_branch
      %217 = sbr.rel (%p214) target = $region12
    $region11: #{esm2_classifier_forward.11} parent=5 // pred_region
      %s218 = ssub.s32 %s12, 1
      // Predicated region
      $region13: #{esm2_classifier_forward.11} parent=11 // pred_check
        %p219 = pneg %p155
      $region14: #{esm2_classifier_forward.11} parent=11 // pred_check_branch
        %221 = sbr.rel (%p219) target = $region16
      $region15: #{esm2_classifier_forward.11} parent=11 // pred_region
        _
      $region16: #{esm2_classifier_forward.11} parent=11 // pred_fallthru
        _
      // Predicated region
      $region17: #{esm2_classifier_forward.11} parent=11 // pred_check
        %p222 = pneg %p176
      $region18: #{esm2_classifier_forward.11} parent=11 // pred_check_branch
        %224 = sbr.rel (%p222) target = $region20
      $region19: #{esm2_classifier_forward.11} parent=11 // pred_region
        _
      $region20: #{esm2_classifier_forward.11} parent=11 // pred_fallthru
        _
    $region12: #{esm2_classifier_forward.11} parent=5 // pred_fallthru
      _
    %p225 = scmp.lt.s32.totalorder %s12, 4
    // Predicated region
    $region21: #{esm2_classifier_forward.11} parent=5 // pred_check
      %p226 = pneg %p225
    $region22: #{esm2_classifier_forward.11} parent=5 // pred_check_branch
      %228 = sbr.rel (%p226) target = $region24
    $region23: #{esm2_classifier_forward.11} parent=5 // pred_region
      // Predicated region
      $region25: #{esm2_classifier_forward.11} parent=23 // pred_check
        %p229 = pneg %p46
      $region26: #{esm2_classifier_forward.11} parent=23 // pred_check_branch
        %231 = sbr.rel (%p229) target = $region28
      $region27: #{esm2_classifier_forward.11} parent=23 // pred_region
        %p232 = scmp.lt.s32.totalorder %s19, 1
        %s233 = scalar_select %p232, %s19, 1
        %p234 = scmp.lt.s32.totalorder %s20, 1
        %s235 = scalar_select %p234, %s20, 1
        %s236 = smul.addr %s233, 2
        %s237 = sadd.s32 %s235, %s236
        %s238 = smul.addr %s237, 4
        %s239 = scalar_lea.vmem %s0, %s238
      $region28: #{esm2_classifier_forward.11} parent=23 // pred_fallthru
        _
      // Predicated region
      $region29: #{esm2_classifier_forward.11} parent=23 // pred_check
        %p240 = pneg %p74
      $region30: #{esm2_classifier_forward.11} parent=23 // pred_check_branch
        %242 = sbr.rel (%p240) target = $region32
      $region31: #{esm2_classifier_forward.11} parent=23 // pred_region
        %p243 = scmp.lt.s32.totalorder %s19, 1
        %s244 = scalar_select %p243, %s19, 1
        %p245 = scmp.lt.s32.totalorder %s20, 1
        %s246 = scalar_select %p245, %s20, 1
        %s247 = smul.addr %s244, 2
        %s248 = sadd.s32 %s246, %s247
        %s249 = smul.addr %s248, 4
        %s250 = scalar_lea.vmem %s1, %s249
      $region32: #{esm2_classifier_forward.11} parent=23 // pred_fallthru
        _
      // Predicated region
      $region33: #{esm2_classifier_forward.11} parent=23 // pred_check
        %p251 = pneg %p102
      $region34: #{esm2_classifier_forward.11} parent=23 // pred_check_branch
        %253 = sbr.rel (%p251) target = $region36
      $region35: #{esm2_classifier_forward.11} parent=23 // pred_region
        %p254 = scmp.lt.s32.totalorder %s19, 1
        %s255 = scalar_select %p254, %s19, 1
        %p256 = scmp.lt.s32.totalorder %s20, 1
        %s257 = scalar_select %p256, %s20, 1
        %s258 = smul.addr %s255, 2
        %s259 = sadd.s32 %s257, %s258
        %s260 = smul.addr %s259, 4
        %s261 = scalar_lea.vmem %s2, %s260
      $region36: #{esm2_classifier_forward.11} parent=23 // pred_fallthru
        _
      // Predicated region
      $region37: #{esm2_classifier_forward.11} parent=23 // pred_check
        %p262 = pneg %p128
      $region38: #{esm2_classifier_forward.11} parent=23 // pred_check_branch
        %264 = sbr.rel (%p262) target = $region40
      $region39: #{esm2_classifier_forward.11} parent=23 // pred_region
        %p265 = scmp.lt.s32.totalorder %s19, 1
        %s266 = scalar_select %p265, %s19, 1
        %s267 = scalar_lea.vmem %s3, %s266
      $region40: #{esm2_classifier_forward.11} parent=23 // pred_fallthru
        _
    $region24: #{esm2_classifier_forward.11} parent=5 // pred_fallthru
      _
    %p268 = scmp.le.s32.totalorder 1, %s12
    %p269 = scmp.lt.s32.totalorder %s12, 5
    %p270 = pnand %p268, %p269
    %p271 = pneg %p270
    // Predicated region
    $region41: #{esm2_classifier_forward.11} parent=5 // pred_check
      _
    $region42: #{esm2_classifier_forward.11} parent=5 // pred_check_branch
      %273 = sbr.rel (%p270) target = $region44
    $region43: #{esm2_classifier_forward.11} parent=5 // pred_region
      %s274 = ssub.s32 %s12, 1
      %p275 = scmp.lt.s32.totalorder %s21, 1
      %s276 = scalar_select %p275, %s21, 1
      %p277 = scmp.lt.s32.totalorder %s22, 1
      %s278 = scalar_select %p277, %s22, 1
      %s279 = smul.addr %s276, 2
      %s280 = sadd.s32 %s278, %s279
      %s281 = smul.addr %s280, 4
      %s282 = scalar_lea.vmem %s0, %s281
      %p283 = pneg %p52
      %p284 = pneg %p49
      %p285 = scmp.lt.s32.totalorder %s21, 1
      %s286 = scalar_select %p285, %s21, 1
      %p287 = scmp.lt.s32.totalorder %s22, 1
      %s288 = scalar_select %p287, %s22, 1
      %s289 = smul.addr %s286, 2
      %s290 = sadd.s32 %s288, %s289
      %s291 = smul.addr %s290, 4
      %s292 = scalar_lea.vmem %s1, %s291
      %p293 = pneg %p80
      %p294 = pneg %p77
      %p295 = scmp.lt.s32.totalorder %s21, 1
      %s296 = scalar_select %p295, %s21, 1
      %p297 = scmp.lt.s32.totalorder %s22, 1
      %s298 = scalar_select %p297, %s22, 1
      %s299 = smul.addr %s296, 2
      %s300 = sadd.s32 %s298, %s299
      %s301 = smul.addr %s300, 4
      %s302 = scalar_lea.vmem %s2, %s301
      %p303 = pneg %p108
      %p304 = pneg %p105
      %p305 = scmp.lt.s32.totalorder %s21, 1
      %s306 = scalar_select %p305, %s21, 1
      %s307 = scalar_lea.vmem %s3, %s306
      %p308 = pneg %p134
      %p309 = pneg %p131
      %p310 = pneg %p155
      %p311 = pneg %p152
      %p312 = pneg %p176
      %p313 = pneg %p173
      %p314 = pneg %p204
      %p315 = pneg %p201
      %p316 = scmp.lt.s32.totalorder %s21, 1
      %s317 = scalar_select %p316, %s21, 1
      %p318 = scmp.lt.s32.totalorder %s22, 1
      %s319 = scalar_select %p318, %s22, 1
      %s320 = smul.addr %s317, 2
      %s321 = sadd.s32 %s319, %s320
      %s322 = smul.addr %s321, 4
      %s323 = scalar_lea.vmem %s6, %s322
      %p324 = scmp.lt.s32.totalorder %s21, 1
      %s325 = scalar_select %p324, %s21, 1
      %p326 = scmp.lt.s32.totalorder %s22, 1
      %s327 = scalar_select %p326, %s22, 1
      %s328 = smul.addr %s325, 2
      %s329 = sadd.s32 %s327, %s328
      %s330 = smul.addr %s329, 4
      %s331 = scalar_lea.vmem %s0, %s330
      %p332 = scmp.lt.s32.totalorder %s21, 1
      %s333 = scalar_select %p332, %s21, 1
      %p334 = scmp.lt.s32.totalorder %s22, 1
      %s335 = scalar_select %p334, %s22, 1
      %s336 = smul.addr %s333, 2
      %s337 = sadd.s32 %s335, %s336
      %s338 = smul.addr %s337, 4
      %s339 = scalar_lea.vmem %s1, %s338
      %p340 = scmp.lt.s32.totalorder %s21, 1
      %s341 = scalar_select %p340, %s21, 1
      %p342 = scmp.lt.s32.totalorder %s22, 1
      %s343 = scalar_select %p342, %s22, 1
      %s344 = smul.addr %s341, 2
      %s345 = sadd.s32 %s343, %s344
      %s346 = smul.addr %s345, 4
      %s347 = scalar_lea.vmem %s2, %s346
      %p348 = scmp.lt.s32.totalorder %s21, 1
      %s349 = scalar_select %p348, %s21, 1
      %s350 = scalar_lea.vmem %s3, %s349
      %p351 = scmp.lt.s32.totalorder %s21, 1
      %s352 = scalar_select %p351, %s21, 1
      %p353 = scmp.lt.s32.totalorder %s22, 1
      %s354 = scalar_select %p353, %s22, 1
      %s355 = smul.addr %s352, 2
      %s356 = sadd.s32 %s354, %s355
      %s357 = smul.addr %s356, 4
      %s358 = scalar_lea.vmem %s6, %s357
      %v360 = vld [vmem:[%s331] sm:$0xf]
      %v361 = vunpack.c.l.bf16 %v360
      %v362 = vld [vmem:[%s339] sm:$0xf]
      %v363 = vunpack.c.l.bf16 %v362
      %v364 = vld [vmem:[%s347] sm:$0xf]
      %v365 = vld [vmem:[%s4] sm:$0xff]
      %v366 = vld [vmem:[%s5] sm:$0xff]
      %v367 = vmul.f32 %v361, %v365
      %369 = vrot.lane.b32.xlu0 %v366, 8
      %v370 = vpop.permute.xlu0 %369
      %v372 = vmul.f32 %v361, %v370
      %374 = vrot.lane.b32.xlu0 %v372, 120
      %v375 = vpop.permute.xlu0 %374
      %v377 = vsub.f32 %v367, %v375
      %379 = vrot.lane.b32.xlu0 %v365, 8
      %v380 = vpop.permute.xlu0 %379
      %v382 = vmul.f32 %v361, %v380
      %v383 = vmul.f32 %v361, %v366
      %385 = vrot.lane.b32.xlu0 %v383, 8
      %v386 = vpop.permute.xlu0 %385
      %v388 = vadd.f32 %v382, %v386
      %vm389 = vcmask 64512
      %v390 = vsel %vm389, %v377, %v388
      %v391 = vmul.f32 %v390, 0.25
      %v392 = vpack.c.bf16 %v391, %v391
      %v393 = vmul.f32 %v363, %v365
      %v394 = vmul.f32 %v363, %v370
      %396 = vrot.lane.b32.xlu0 %v394, 120
      %v397 = vpop.permute.xlu0 %396
      %v399 = vsub.f32 %v393, %v397
      %v400 = vmul.f32 %v363, %v380
      %v401 = vmul.f32 %v363, %v366
      %403 = vrot.lane.b32.xlu0 %v401, 8
      %v404 = vpop.permute.xlu0 %403
      %v406 = vadd.f32 %v400, %v404
      %v407 = vsel %vm389, %v399, %v406
      %v408 = vpack.c.bf16 %v407, %v407
      %v409 = vld [vmem:[%s350] sm:$0x1]
      %v411 = vperm.slane %v409, 0
      %vm413 = vcmask 130048
      %v415 = vsel %vm413, %v392, 0
      %v418 = vsel %vm413, %v408, 0
      %420 = vmatpush.bf16.xpose.msra.mxu0 0
      %421 = vmatpush.bf16.xpose.msra.mxu0 0
      %422 = vmatpush.bf16.xpose.msra.mxu0 0
      %423 = vmatpush.bf16.xpose.msra.mxu0 0
      %424 = vmatpush.bf16.xpose.msra.mxu0 0
      %425 = vmatpush.bf16.xpose.msra.mxu0 0
      %426 = vmatpush.bf16.xpose.msra.mxu0 0
      %427 = vmatpush.bf16.xpose.msra.mxu0 %v418
      %428 = vmatmul.bf16.gmra.mxu0 %v415
      %v429 = vpop.f32.mrf.mxu0
      %v430 = vadd.f32 %v411, %v429
      %v431 = vpop.f32.mrf.mxu0
      %432 = vdwg.mxu0
      %v433 = vsel %vm389, %v430, -inf
      %434 = vmax.xlane.f32.xlu0 %v433
      %v435 = vpop.xlane.xlu0 %434
      %v436 = vsub.f32 %v430, %v435
      %v437 = vmul.f32 %v436, 1.442695
      %v438 = vpow.pop %v437
      %v439 = vsel %vm389, %v438, 0.0
      %440 = vadd.xlane.f32.xlu0 %v439
      %v441 = vpop.xlane.xlu0 %440
      %v442 = vrcp.pop %v441
      %v443 = vmul.f32 %v438, %v442
      %v444 = vpack.c.bf16 %v443, %v443
      %v446 = vsel %vm389, %v444, 0
      %vm448 = vcmask 1043456
      %v450 = vsel %vm448, %v364, 0
      %452 = vmatpush.bf16.msra.mxu0 0
      %453 = vmatpush.bf16.msra.mxu0 0
      %454 = vmatpush.bf16.msra.mxu0 0
      %455 = vmatpush.bf16.msra.mxu0 0
      %456 = vmatpush.bf16.msra.mxu0 0
      %457 = vmatpush.bf16.msra.mxu0 0
      %458 = vmatpush.bf16.msra.mxu0 0
      %459 = vmatpush.bf16.msra.mxu0 %v450
      %460 = vmatmul.bf16.gmra.mxu0 %v446
      %v461 = vpop.f32.mrf.mxu0
      %v462 = vadd.f32 0.0, %v461
      %v463 = vpop.f32.mrf.mxu0
      %464 = vdwg.mxu0
      %v465 = vpack.c.bf16 %v462, %v462
      %vm466 = vcmask 125952
      %467 = vst.msk [vmem:[%s358] sm:$0xf] %vm466, %v465
      %p468 = scmp.lt.s32.totalorder %s21, 1
      %s469 = scalar_select %p468, %s21, 1
      %p470 = scmp.lt.s32.totalorder %s22, 1
      %s471 = scalar_select %p470, %s22, 1
      %s472 = smul.addr %s469, 2
      %s473 = sadd.s32 %s471, %s472
      %s474 = smul.addr %s473, 4
      %s475 = scalar_lea.vmem %s6, %s474
      // Predicated region
      $region45: #{esm2_classifier_forward.11} parent=43 // pred_check
        %p476 = pneg %p201
      $region46: #{esm2_classifier_forward.11} parent=43 // pred_check_branch
        %478 = sbr.rel (%p476) target = $region48
      $region47: #{esm2_classifier_forward.11} parent=43 // pred_region
        _
      $region48: #{esm2_classifier_forward.11} parent=43 // pred_fallthru
        _
    $region44: #{esm2_classifier_forward.11} parent=5 // pred_fallthru
      _
    %p479 = scmp.le.s32.totalorder 2, %s12
    // Predicated region
    $region49: #{esm2_classifier_forward.11} parent=5 // pred_check
      %p480 = pneg %p479
    $region50: #{esm2_classifier_forward.11} parent=5 // pred_check_branch
      %482 = sbr.rel (%p480) target = $region52
    $region51: #{esm2_classifier_forward.11} parent=5 // pred_region
      %s483 = ssub.s32 %s12, 2
      // Predicated region
      $region53: #{esm2_classifier_forward.11} parent=51 // pred_check
        %p484 = pneg %p207
      $region54: #{esm2_classifier_forward.11} parent=51 // pred_check_branch
        %486 = sbr.rel (%p484) target = $region56
      $region55: #{esm2_classifier_forward.11} parent=51 // pred_region
        %p487 = scmp.lt.s32.totalorder %s23, 1
        %s488 = scalar_select %p487, %s23, 1
        %p489 = scmp.lt.s32.totalorder %s24, 1
        %s490 = scalar_select %p489, %s24, 1
        %s491 = smul.addr %s488, 2
        %s492 = sadd.s32 %s490, %s491
        %s493 = smul.addr %s492, 4
        %s494 = scalar_lea.vmem %s6, %s493
      $region56: #{esm2_classifier_forward.11} parent=51 // pred_fallthru
        _
    $region52: #{esm2_classifier_forward.11} parent=5 // pred_fallthru
      _
  $region6: #{esm2_classifier_forward.11} parent=0 // loop_footer
    %s16 = sadd.s32 1, %s12
  $region7: #{esm2_classifier_forward.11} parent=0 // loop_footer_branch
    %11 = sbr.rel target = $region3
  $region8: #{esm2_classifier_forward.11} parent=0 // loop_exit
    _

// kernel: esm2_classifier_forward.14
$region0: #{esm2_classifier_forward.14}
  #allocation0 [shape = 'u32[]', space=smem, size = 0x4, offset = 0x4, fixed_abs, tag = 'smem constant byte address 0x4 - core index']
  #allocation1 [shape = 'u32[72,128]{1,0:T(1,128)}', space=vmem, size = 0x9000, scoped, tag = 'internal scratch']
  #allocation2 [shape = 'f32[16,32]{1,0:T(8,128)}', space=vmem, size = 0x2000, scoped, tag = 'scratch operand']
  %s0 = inlined_call_operand.vmem [shape: bf16[16,128], index: 0, kind: input, shape index: {}]
  %s1 = inlined_call_operand.vmem [shape: bf16[128,32], index: 1, kind: input, shape index: {}]
  %s2 = inlined_call_operand.vmem [shape: f32[1,32], index: 2, kind: input, shape index: {}]
  %s3 = inlined_call_operand.vmem [shape: f32[16,32], index: 3, kind: input, shape index: {}]
  %s4 = inlined_call_operand.vmem [shape: f32[16,32], index: 4, kind: output, shape index: {}]
  %s5 = sld [smem:[#allocation0]]
  $region34: #{esm2_classifier_forward.14} parent=0
    _
  %s7 = ssub.s32 1, %s5
  %s8 = scalar_select 0, %s7, %s5
  // Predicated region
  $region2: #{esm2_classifier_forward.14} parent=0 // pred_check
    _
  $region3: #{esm2_classifier_forward.14} parent=0 // pred_check_branch
    %10 = sbr.rel (0) target = $region5
  $region4: #{esm2_classifier_forward.14} parent=0 // pred_region
    _
  $region5: #{esm2_classifier_forward.14} parent=0 // pred_fallthru
    _
  // Predicated region
  $region6: #{esm2_classifier_forward.14} parent=0 // pred_check
    _
  $region7: #{esm2_classifier_forward.14} parent=0 // pred_check_branch
    %12 = sbr.rel (0) target = $region9
  $region8: #{esm2_classifier_forward.14} parent=0 // pred_region
    _
  $region9: #{esm2_classifier_forward.14} parent=0 // pred_fallthru
    _
  // Predicated region
  $region10: #{esm2_classifier_forward.14} parent=0 // pred_check
    _
  $region11: #{esm2_classifier_forward.14} parent=0 // pred_check_branch
    %14 = sbr.rel (0) target = $region13
  $region12: #{esm2_classifier_forward.14} parent=0 // pred_region
    _
  $region13: #{esm2_classifier_forward.14} parent=0 // pred_fallthru
    _
  // Predicated region
  $region14: #{esm2_classifier_forward.14} parent=0 // pred_check
    _
  $region15: #{esm2_classifier_forward.14} parent=0 // pred_check_branch
    %16 = sbr.rel (0) target = $region17
  $region16: #{esm2_classifier_forward.14} parent=0 // pred_region
    _
  $region17: #{esm2_classifier_forward.14} parent=0 // pred_fallthru
    _
  %p17 = scmp.eq.s32.totalorder 0, 0
  // Predicated region
  $region18: #{esm2_classifier_forward.14} parent=0 // pred_check
    %p18 = pneg %p17
  $region19: #{esm2_classifier_forward.14} parent=0 // pred_check_branch
    %20 = sbr.rel (%p18) target = $region21
  $region20: #{esm2_classifier_forward.14} parent=0 // pred_region
    %vm21 = vcmask 261120
    %22 = vst.msk [vmem:[#allocation2] sm:$0xff] %vm21, 0.0
    %23 = vst.msk [vmem:[#allocation2 + $0x8] sm:$0xff] %vm21, 0.0
  $region21: #{esm2_classifier_forward.14} parent=0 // pred_fallthru
    _
  %v24 = vld [vmem:[#allocation2] sm:$0xff]
  %v25 = vld [vmem:[#allocation2 + $0x8] sm:$0xff]
  %v26 = vld [vmem:[%s0] sm:$0xf]
  %v27 = vld [vmem:[%s0 + $0x4] sm:$0xf]
  %v28 = vld [vmem:[%s1] sm:$0xf]
  %v29 = vld [vmem:[%s1 + $0x4] sm:$0xf]
  %v30 = vld [vmem:[%s1 + $0x8] sm:$0xf]
  %v31 = vld [vmem:[%s1 + $0xc] sm:$0xf]
  %v32 = vld [vmem:[%s1 + $0x10] sm:$0xf]
  %v33 = vld [vmem:[%s1 + $0x14] sm:$0xf]
  %v34 = vld [vmem:[%s1 + $0x18] sm:$0xf]
  %v35 = vld [vmem:[%s1 + $0x1c] sm:$0xf]
  %v36 = vld [vmem:[%s1 + $0x20] sm:$0xf]
  %v37 = vld [vmem:[%s1 + $0x24] sm:$0xf]
  %v38 = vld [vmem:[%s1 + $0x28] sm:$0xf]
  %v39 = vld [vmem:[%s1 + $0x2c] sm:$0xf]
  %v40 = vld [vmem:[%s1 + $0x30] sm:$0xf]
  %v41 = vld [vmem:[%s1 + $0x34] sm:$0xf]
  %v42 = vld [vmem:[%s1 + $0x38] sm:$0xf]
  %v43 = vld [vmem:[%s1 + $0x3c] sm:$0xf]
  %v46 = vunpack.c.l.b16 %v26
  %v47 = vunpack.c.l.b16 %v27
  %v48 = vpack.c.b16 %v47, %v46
  %v66 = vunpack.c.l.b16 %v28
  %v67 = vunpack.c.l.b16 %v29
  %v68 = vunpack.c.l.b16 %v30
  %v69 = vunpack.c.l.b16 %v31
  %v70 = vunpack.c.l.b16 %v32
  %v71 = vunpack.c.l.b16 %v33
  %v72 = vunpack.c.l.b16 %v34
  %v73 = vunpack.c.l.b16 %v35
  %v74 = vunpack.c.l.b16 %v36
  %v75 = vunpack.c.l.b16 %v37
  %v76 = vunpack.c.l.b16 %v38
  %v77 = vunpack.c.l.b16 %v39
  %v78 = vunpack.c.l.b16 %v40
  %v79 = vunpack.c.l.b16 %v41
  %v80 = vunpack.c.l.b16 %v42
  %v81 = vunpack.c.l.b16 %v43
  %v82 = vpack.c.b16 %v67, %v66
  %v83 = vpack.c.b16 %v69, %v68
  %v84 = vpack.c.b16 %v71, %v70
  %v85 = vpack.c.b16 %v73, %v72
  %v86 = vpack.c.b16 %v75, %v74
  %v87 = vpack.c.b16 %v77, %v76
  %v88 = vpack.c.b16 %v79, %v78
  %v89 = vpack.c.b16 %v81, %v80
  %98 = vmatpush.bf16.msra.mxu0 %v89
  %99 = vmatpush.bf16.msra.mxu0 %v88
  %100 = vmatpush.bf16.msra.mxu0 %v87
  %101 = vmatpush.bf16.msra.mxu0 %v86
  %102 = vmatpush.bf16.msra.mxu0 %v85
  %103 = vmatpush.bf16.msra.mxu0 %v84
  %104 = vmatpush.bf16.msra.mxu0 %v83
  %105 = vmatpush.bf16.msra.mxu0 %v82
  %106 = vmatmul.bf16.gmra.mxu0 %v48
  %v107 = vpop.f32.mrf.mxu0
  %v108 = vadd.f32 0.0, %v107
  %v109 = vpop.f32.mrf.mxu0
  %v110 = vadd.f32 0.0, %v109
  %111 = vdwg.mxu0
  %v112 = vadd.f32 %v24, %v108
  %v113 = vadd.f32 %v25, %v110
  %vm114 = vcmask 261120
  %115 = vst.msk [vmem:[#allocation2] sm:$0xff] %vm114, %v112
  %116 = vst.msk [vmem:[#allocation2 + $0x8] sm:$0xff] %vm114, %v113
  // Predicated region
  $region22: #{esm2_classifier_forward.14} parent=0 // pred_check
    %p117 = pneg %p17
  $region23: #{esm2_classifier_forward.14} parent=0 // pred_check_branch
    %119 = sbr.rel (%p117) target = $region25
  $region24: #{esm2_classifier_forward.14} parent=0 // pred_region
    %v120 = vld [vmem:[#allocation2] sm:$0xff]
    %v121 = vld [vmem:[#allocation2 + $0x8] sm:$0xff]
    %v122 = vld [vmem:[%s2] sm:$0x1]
    %v124 = vperm.slane %v122, 0
    %v126 = vadd.f32 %v120, %v124
    %v127 = vadd.f32 %v121, %v124
    %v128 = vld [vmem:[%s3] sm:$0xff]
    %v129 = vld [vmem:[%s3 + $0x8] sm:$0xff]
    %v130 = vadd.f32 %v126, %v128
    %v131 = vadd.f32 %v127, %v129
    %132 = vst.msk [vmem:[%s4] sm:$0xff] %vm114, %v130
    %133 = vst.msk [vmem:[%s4 + $0x8] sm:$0xff] %vm114, %v131
  $region25: #{esm2_classifier_forward.14} parent=0 // pred_fallthru
    _
  // Predicated region
  $region26: #{esm2_classifier_forward.14} parent=0 // pred_check
    _
  $region27: #{esm2_classifier_forward.14} parent=0 // pred_check_branch
    %135 = sbr.rel (0) target = $region29
  $region28: #{esm2_classifier_forward.14} parent=0 // pred_region
    _
  $region29: #{esm2_classifier_forward.14} parent=0 // pred_fallthru
    _
  // Predicated region
  $region30: #{esm2_classifier_forward.14} parent=0 // pred_check
    _
  $region31: #{esm2_classifier_forward.14} parent=0 // pred_check_branch
    %137 = sbr.rel (0) target = $region33
  $region32: #{esm2_classifier_forward.14} parent=0 // pred_region
    _
  $region33: #{esm2_classifier_forward.14} parent=0 // pred_fallthru
    _

</llo_original>
